<compile_context>
chip_gen: v5e
topology: v5e:2x2
jax: 0.10.0
libtpu: 0.0.40
codegen_flags: <defaults>
</compile_context>

<pallas_src>
import functools

import numpy as np
import jax
import jax.numpy as jnp
from jax import lax
from jax.experimental import pallas as pl
from jax.experimental.pallas import tpu as pltpu

_SQRT2 = float(np.sqrt(2.0))
_LANE = 128


# ---------------------------------------------------------------------------
# Host-side construction of the constant mesh unitary (MZIA / MZIB / Diag1).
# ---------------------------------------------------------------------------
def _psdc_matrix(theta):
    """One PSDC stage: phase e^{i*theta} on arm X, then 50/50 coupler."""
    e = np.exp(1j * float(theta))
    return np.array([[e, 1j], [1j * e, 1.0]], dtype=np.complex128) / _SQRT2


def _layer_matrix(H, layer_idx, a0, a1):
    """H x H unitary of one mesh layer (MZIA if layer_idx even, MZIB if odd)."""
    U = np.eye(H, dtype=np.complex128)
    offset = 0 if layer_idx % 2 == 0 else 1   # MZIB pairs (1,2),(3,4),...
    for k in range(a0.shape[0]):
        r = offset + 2 * k
        # angle0 stage followed by angle1 stage, exactly like MZIB.forward.
        M = _psdc_matrix(a1[k]) @ _psdc_matrix(a0[k])
        U[r:r + 2, r:r + 2] = M
    return U   # MZIB rows 0 and H-1 stay identity (pass-through)


def _build_mesh_unitary(mesh_angles, diag_angle, H):
    U = np.eye(H, dtype=np.complex128)
    for l, (a0, a1) in enumerate(mesh_angles):
        U = _layer_matrix(H, l, np.asarray(a0, np.float64),
                          np.asarray(a1, np.float64)) @ U
    U = np.diag(np.exp(1j * np.asarray(diag_angle, np.float64))) @ U   # Diag1
    return U


# ---------------------------------------------------------------------------
# Pallas kernel: full fused time recurrence per batch tile.
# State layout: stacked [h_real; h_imag] with H on sublanes, batch on lanes.
# ---------------------------------------------------------------------------
def _elman_kernel(T, H, n_split,
                  x_ref, wc_ref, win_ref, bin_ref, brelu_ref, init_ref,
                  woutc_ref, bout_ref, o_ref):
    two_h = 2 * H
    Bt = x_ref.shape[1]
    Bs = Bt // n_split
    Cr = o_ref.shape[0]

    wc = wc_ref[...]                 # (2H, 2H) fused complex->real unitary
    woutc = woutc_ref[...]           # (2Cr, 2H) fused output projection
    cast = wc.dtype == jnp.bfloat16  # trace-time decision

    # Hoisted broadcasts (JAX does not CSE broadcast_in_dim; do them once).
    win_b = jnp.broadcast_to(win_ref[...], (two_h, Bs))
    bin_b = jnp.broadcast_to(bin_ref[...], (two_h, Bs))
    brelu_b = jnp.broadcast_to(brelu_ref[...], (H, Bs))
    bout_b = jnp.broadcast_to(bout_ref[...], (2 * Cr, Bt))
    h0 = jnp.broadcast_to(init_ref[...], (two_h, Bs))

    def modrelu(a):
        aR = a[:H, :]
        aI = a[H:, :]
        m2 = aR * aR + aI * aI
        inv = lax.rsqrt(m2 + 1e-12)                       # EUP slot
        scale = jnp.maximum(m2 * inv + brelu_b, 0.0) * inv
        return jnp.concatenate([scale * aR, scale * aI], axis=0)

    def step(i, carry):
        xrow = x_ref[pl.ds(i, 1), :]                      # (1, Bt) pixel row
        new = []
        for s in range(n_split):      # independent lane halves -> MXU/VPU overlap
            h = carry[s]
            xs = xrow if n_split == 1 else xrow[:, s * Bs:(s + 1) * Bs]
            # input unit: complex Linear(1 -> H)
            ih = win_b * xs + bin_b
            # hidden unit: whole mesh + Diag1, one fused 2Hx2H MXU matmul
            hs = h.astype(wc.dtype) if cast else h
            a = jnp.dot(wc, hs, preferred_element_type=jnp.float32) + ih
            # CmplxAdd + CmodReLU
            new.append(modrelu(a))
        return tuple(new)

    carry = lax.fori_loop(0, T, step, tuple(h0 for _ in range(n_split)))
    h = carry[0] if n_split == 1 else jnp.concatenate(carry, axis=1)

    # output complex Linear(H -> C) + |.|^2, fused as one (2Cr, 2H) matmul
    hs = h.astype(woutc.dtype) if cast else h
    out = jnp.dot(woutc, hs, preferred_element_type=jnp.float32) + bout_b
    oR = out[:Cr, :]
    oI = out[Cr:, :]
    o_ref[...] = oR * oR + oI * oI


# ---------------------------------------------------------------------------
# Parameters (deterministic, same shapes as the PyTorch __init__).
# ---------------------------------------------------------------------------
def init_params(key, num_infeatures, hidden_size, num_classes, num_layers):
    assert hidden_size % 2 == 0
    keys = jax.random.split(key, 8 + 2 * num_layers)
    PI = np.pi
    p = {}
    p["in_wR"] = 0.01 * jax.random.normal(keys[0], (hidden_size, num_infeatures), jnp.float32)
    p["in_wI"] = 0.01 * jax.random.normal(keys[1], (hidden_size, num_infeatures), jnp.float32)
    p["in_bR"] = 0.01 * jax.random.normal(keys[2], (hidden_size,), jnp.float32)
    p["in_bI"] = 0.01 * jax.random.normal(keys[3], (hidden_size,), jnp.float32)
    angles = []
    for l in range(num_layers):
        half = hidden_size // 2 if l % 2 == 0 else (hidden_size - 1) // 2
        a0 = jax.random.uniform(keys[8 + 2 * l], (half,), jnp.float32, -PI, PI)
        a1 = jax.random.uniform(keys[8 + 2 * l + 1], (half,), jnp.float32, -PI, PI)
        angles.append((a0, a1))
    p["mesh_angles"] = angles
    p["diag_angle"] = jnp.zeros((hidden_size,), jnp.float32)
    p["modrelu_b"] = jnp.zeros((hidden_size,), jnp.float32)
    p["init_R"] = jnp.zeros((hidden_size,), jnp.float32)
    p["init_I"] = jnp.zeros((hidden_size,), jnp.float32)
    p["out_wR"] = 0.1 * jax.random.normal(keys[4], (num_classes, hidden_size), jnp.float32)
    p["out_wI"] = 0.1 * jax.random.normal(keys[5], (num_classes, hidden_size), jnp.float32)
    p["out_bR"] = 0.1 * jax.random.normal(keys[6], (num_classes,), jnp.float32)
    p["out_bI"] = 0.1 * jax.random.normal(keys[7], (num_classes,), jnp.float32)
    return p


# ---------------------------------------------------------------------------
# Wrapper: padding / tiling / pallas_call.
# ---------------------------------------------------------------------------
def mod_elman_forward(inputs, params, num_layers, *, batch_tile=256,
                      use_bf16_matmul=False):
    """inputs: (num_pixels, batch) f32 -> out_power: (num_classes, batch) f32."""
    T, B = inputs.shape
    H = params["in_wR"].shape[0]
    C = params["out_wR"].shape[0]
    assert params["in_wR"].shape[1] == 1, "pixel-by-pixel model uses 1 input feature"
    assert len(params["mesh_angles"]) == num_layers
    assert H % 8 == 0

    # ---- batch tiling: batch lives on the lane axis ------------------------
    B_units = (B + _LANE - 1) // _LANE
    max_units = max(1, batch_tile // _LANE)
    # guarantee >= 2 batch tiles whenever possible (v7x: 2 TensorCores)
    units = min(max_units, max(1, B_units // 2)) if B_units >= 2 else 1
    Bt = units * _LANE
    nb = (B_units + units - 1) // units
    B_pad = nb * Bt
    # two independent 128-lane halves per step when the tile is wide enough
    n_split = 2 if (Bt >= 256 and Bt % 256 == 0) else 1

    T_pad = ((T + 7) // 8) * 8
    two_h = 2 * H
    Cr = ((C + 7) // 8) * 8

    # lane-dense 2-D pixel input (no size-1 lane dim)
    x2 = jnp.zeros((T_pad, B_pad), jnp.float32)
    x2 = x2.at[:T, :B].set(inputs.astype(jnp.float32))

    # stacked [real; imag] column-vector parameters (H on sublanes)
    win_s = jnp.concatenate(
        [params["in_wR"], params["in_wI"]], axis=0).astype(jnp.float32)       # (2H, 1)
    bin_s = jnp.concatenate(
        [params["in_bR"], params["in_bI"]], axis=0).reshape(two_h, 1).astype(jnp.float32)
    init_s = jnp.concatenate(
        [params["init_R"], params["init_I"]], axis=0).reshape(two_h, 1).astype(jnp.float32)
    brelu = params["modrelu_b"].reshape(H, 1).astype(jnp.float32)

    # whole mesh + Diag1 as ONE real (2H, 2H) matrix acting on [h_R; h_I]
    U = _build_mesh_unitary(params["mesh_angles"], params["diag_angle"], H)
    UR = U.real.astype(np.float32)
    UI = U.imag.astype(np.float32)
    wc_dtype = jnp.bfloat16 if use_bf16_matmul else jnp.float32
    wc = jnp.asarray(np.block([[UR, -UI], [UI, UR]]), wc_dtype)               # (2H, 2H)

    # fused output projection (2Cr, 2H), class dim padded to a sublane multiple
    woutR = np.asarray(params["out_wR"], np.float32)
    woutI = np.asarray(params["out_wI"], np.float32)
    WoutC = np.zeros((2 * Cr, two_h), np.float32)
    WoutC[:C, :H] = woutR
    WoutC[:C, H:] = -woutI
    WoutC[Cr:Cr + C, :H] = woutI
    WoutC[Cr:Cr + C, H:] = woutR
    woutc = jnp.asarray(WoutC, wc_dtype)

    bout_np = np.zeros((2 * Cr, 1), np.float32)
    bout_np[:C, 0] = np.asarray(params["out_bR"], np.float32)
    bout_np[Cr:Cr + C, 0] = np.asarray(params["out_bI"], np.float32)
    bout_s = jnp.asarray(bout_np)

    operands = [x2, wc, win_s, bin_s, brelu, init_s, woutc, bout_s]

    in_specs = [pl.BlockSpec((T_pad, Bt), lambda b: (0, b))]
    for a in operands[1:]:
        in_specs.append(pl.BlockSpec(a.shape, lambda b: (0, 0)))

    kernel = functools.partial(_elman_kernel, T, H, n_split)

    out_full = pl.pallas_call(
        kernel,
        out_shape=jax.ShapeDtypeStruct((Cr, B_pad), jnp.float32),
        grid_spec=pltpu.PrefetchScalarGridSpec(
            num_scalar_prefetch=0,
            grid=(nb,),                              # batch tiles only
            in_specs=in_specs,
            out_specs=pl.BlockSpec((Cr, Bt), lambda b: (0, b)),
        ),
        compiler_params=pltpu.CompilerParams(
            dimension_semantics=("parallel",)),
    )(*operands)

    # PyTorch convention: (num_classes, batch_size) — already in that layout.
    return out_full[:C, :B]


# ---------------------------------------------------------------------------
# Pure numpy reference (mirrors the PyTorch MZIA/MZIB slicing directly).
# ---------------------------------------------------------------------------
def reference_forward_np(inputs, params):
    x = np.asarray(inputs, np.float64)                      # (T, B)
    T, B = x.shape
    win = (np.asarray(params["in_wR"], np.float64)
           + 1j * np.asarray(params["in_wI"], np.float64))  # (H, 1)
    bin_ = (np.asarray(params["in_bR"], np.float64)
            + 1j * np.asarray(params["in_bI"], np.float64))[:, None]
    brelu = np.asarray(params["modrelu_b"], np.float64)[:, None]
    wout = (np.asarray(params["out_wR"], np.float64)
            + 1j * np.asarray(params["out_wI"], np.float64))
    bout = (np.asarray(params["out_bR"], np.float64)
            + 1j * np.asarray(params["out_bI"], np.float64))[:, None]
    phase = np.exp(1j * np.asarray(params["diag_angle"], np.float64))[:, None]

    def psdc(xa, ya, ang):
        xps = np.exp(1j * ang)[:, None] * xa
        return (xps + 1j * ya) / _SQRT2, (ya + 1j * xps) / _SQRT2

    h = (np.asarray(params["init_R"], np.float64)
         + 1j * np.asarray(params["init_I"], np.float64))[:, None] * np.ones((1, B))
    for t in range(T):
        ih = win @ x[t][None, :] + bin_
        m = h.copy()
        for l, (a0, a1) in enumerate(params["mesh_angles"]):
            a0 = np.asarray(a0, np.float64)
            a1 = np.asarray(a1, np.float64)
            out = m.copy()
            if l % 2 == 0:                         # MZIA: pairs (0,1),(2,3),...
                ox, oy = psdc(m[0::2, :], m[1::2, :], a0)
                ox, oy = psdc(ox, oy, a1)
                out[0::2, :], out[1::2, :] = ox, oy
            else:                                  # MZIB: rows 0 and -1 pass
                ox, oy = psdc(m[1:-1:2, :], m[2::2, :], a0)
                ox, oy = psdc(ox, oy, a1)
                out[1:-1:2, :], out[2::2, :] = ox, oy
            m = out
        m = phase * m                              # Diag1
        a = ih + m
        m2 = a.real ** 2 + a.imag ** 2
        inv = 1.0 / np.sqrt(m2 + 1e-12)
        scale = np.maximum(m2 * inv + brelu, 0.0) * inv
        h = scale * a
    out = wout @ h + bout
    return out.real ** 2 + out.imag ** 2           # (C, B)


if __name__ == "__main__":
    num_infeatures = 1      # pixel-by-pixel: one feature per step
    hidden_size = 128       # "H128": one lane width
    num_classes = 10
    num_layers = 6          # original is L20; kept small for the demo
    num_pixels = 12         # original is 784; kept small for the demo
    batch_size = 4

    key = jax.random.PRNGKey(0)
    pkey, xkey, xkey2 = jax.random.split(key, 3)
    params = init_params(pkey, num_infeatures, hidden_size, num_classes, num_layers)
    inputs = jax.random.uniform(xkey, (num_pixels, batch_size), jnp.float32)

    # --- small batch (single tile, n_split = 1) -----------------------------
    out_power = mod_elman_forward(inputs, params, num_layers)
    out_power = jax.block_until_ready(out_power)
    assert out_power.shape == (num_classes, batch_size)
    assert bool(jnp.all(jnp.isfinite(out_power)))

    ref = reference_forward_np(inputs, params)
    err = float(np.max(np.abs(np.asarray(out_power, np.float64) - ref)))
    scale = max(1e-6, float(np.max(np.abs(ref))))
    assert err / scale < 2e-2, f"kernel vs reference mismatch: {err} (scale {scale})"

    # --- larger batch (2 batch tiles, 2 lane halves per step) ---------------
    big_batch = 512
    inputs2 = jax.random.uniform(xkey2, (num_pixels, big_batch), jnp.float32)
    out2 = jax.block_until_ready(mod_elman_forward(inputs2, params, num_layers))
    assert out2.shape == (num_classes, big_batch)
    ref2 = reference_forward_np(inputs2, params)
    err2 = float(np.max(np.abs(np.asarray(out2, np.float64) - ref2)))
    scale2 = max(1e-6, float(np.max(np.abs(ref2))))
    assert err2 / scale2 < 2e-2, f"big-batch mismatch: {err2} (scale {scale2})"

    # --- bf16 matmul path: smoke test (f32 state, bf16 weights) -------------
    out_bf16 = jax.block_until_ready(
        mod_elman_forward(inputs, params, num_layers, use_bf16_matmul=True))
    assert bool(jnp.all(jnp.isfinite(out_bf16)))

    print("KERNEL_OK")
</pallas_src>

<mosaic_0001>
module attributes {stable_mosaic.version = 11 : i64} {
  func.func @_elman_kernel(%arg0: i32, %arg1: memref<16x128xf32, #tpu.memory_space<vmem>>, %arg2: memref<256x256xf32, #tpu.memory_space<vmem>>, %arg3: memref<256x1xf32, #tpu.memory_space<vmem>>, %arg4: memref<256x1xf32, #tpu.memory_space<vmem>>, %arg5: memref<128x1xf32, #tpu.memory_space<vmem>>, %arg6: memref<256x1xf32, #tpu.memory_space<vmem>>, %arg7: memref<32x256xf32, #tpu.memory_space<vmem>>, %arg8: memref<32x1xf32, #tpu.memory_space<vmem>>, %arg9: memref<16x128xf32, #tpu.memory_space<vmem>>) attributes {dimension_semantics = [#tpu.dimension_semantics<parallel>], iteration_bounds = array<i64: 1>, scalar_prefetch = 0 : i64, scratch_operands = 0 : i64, tpu.core_type = #tpu.core_type<tc>, window_params = [{transform_indices = @transform_0, window_bounds = array<i64: 16, 128>}, {pipeline_mode = #tpu.pipeline_mode<synchronous>, transform_indices = @transform_1, window_bounds = array<i64: 256, 256>}, {pipeline_mode = #tpu.pipeline_mode<synchronous>, transform_indices = @transform_2, window_bounds = array<i64: 256, 1>}, {pipeline_mode = #tpu.pipeline_mode<synchronous>, transform_indices = @transform_3, window_bounds = array<i64: 256, 1>}, {pipeline_mode = #tpu.pipeline_mode<synchronous>, transform_indices = @transform_4, window_bounds = array<i64: 128, 1>}, {pipeline_mode = #tpu.pipeline_mode<synchronous>, transform_indices = @transform_5, window_bounds = array<i64: 256, 1>}, {pipeline_mode = #tpu.pipeline_mode<synchronous>, transform_indices = @transform_6, window_bounds = array<i64: 32, 256>}, {pipeline_mode = #tpu.pipeline_mode<synchronous>, transform_indices = @transform_7, window_bounds = array<i64: 32, 1>}, {transform_indices = @transform_8, window_bounds = array<i64: 16, 128>}]} {
    %c0 = arith.constant 0 : index
    %c0_0 = arith.constant 0 : index
    %0 = vector.load %arg2[%c0, %c0_0] : memref<256x256xf32, #tpu.memory_space<vmem>>, vector<256x256xf32>
    %c0_1 = arith.constant 0 : index
    %c0_2 = arith.constant 0 : index
    %1 = vector.load %arg7[%c0_1, %c0_2] : memref<32x256xf32, #tpu.memory_space<vmem>>, vector<32x256xf32>
    %c0_3 = arith.constant 0 : index
    %c0_4 = arith.constant 0 : index
    %2 = vector.load %arg3[%c0_3, %c0_4] : memref<256x1xf32, #tpu.memory_space<vmem>>, vector<256x1xf32>
    %3 = vector.shape_cast %2 : vector<256x1xf32> to vector<256x1xf32>
    %4 = vector.broadcast %3 : vector<256x1xf32> to vector<256x128xf32>
    %c0_5 = arith.constant 0 : index
    %c0_6 = arith.constant 0 : index
    %5 = vector.load %arg4[%c0_5, %c0_6] : memref<256x1xf32, #tpu.memory_space<vmem>>, vector<256x1xf32>
    %6 = vector.shape_cast %5 : vector<256x1xf32> to vector<256x1xf32>
    %7 = vector.broadcast %6 : vector<256x1xf32> to vector<256x128xf32>
    %c0_7 = arith.constant 0 : index
    %c0_8 = arith.constant 0 : index
    %8 = vector.load %arg5[%c0_7, %c0_8] : memref<128x1xf32, #tpu.memory_space<vmem>>, vector<128x1xf32>
    %9 = vector.shape_cast %8 : vector<128x1xf32> to vector<128x1xf32>
    %10 = vector.broadcast %9 : vector<128x1xf32> to vector<128x128xf32>
    %c0_9 = arith.constant 0 : index
    %c0_10 = arith.constant 0 : index
    %11 = vector.load %arg8[%c0_9, %c0_10] : memref<32x1xf32, #tpu.memory_space<vmem>>, vector<32x1xf32>
    %12 = vector.shape_cast %11 : vector<32x1xf32> to vector<32x1xf32>
    %13 = vector.broadcast %12 : vector<32x1xf32> to vector<32x128xf32>
    %c0_11 = arith.constant 0 : index
    %c0_12 = arith.constant 0 : index
    %14 = vector.load %arg6[%c0_11, %c0_12] : memref<256x1xf32, #tpu.memory_space<vmem>>, vector<256x1xf32>
    %15 = vector.shape_cast %14 : vector<256x1xf32> to vector<256x1xf32>
    %16 = vector.broadcast %15 : vector<256x1xf32> to vector<256x128xf32>
    %c0_i32 = arith.constant 0 : i32
    %c12_i32 = arith.constant 12 : i32
    %17 = arith.addi %c0_i32, %c12_i32 : i32
    %c1_i32 = arith.constant 1 : i32
    %18 = scf.for %arg10 = %c0_i32 to %17 step %c1_i32 iter_args(%arg11 = %16) -> (vector<256x128xf32>)  : i32 {
      %27 = arith.index_cast %arg10 : i32 to index
      %c0_16 = arith.constant 0 : index
      %28 = vector.load %arg1[%27, %c0_16] : memref<16x128xf32, #tpu.memory_space<vmem>>, vector<1x128xf32>
      %29 = vector.broadcast %28 : vector<1x128xf32> to vector<256x128xf32>
      %30 = arith.mulf %4, %29 : vector<256x128xf32>
      %31 = arith.addf %30, %7 : vector<256x128xf32>
      %cst_17 = arith.constant dense<0.000000e+00> : vector<256x128xf32>
      %32 = tpu.matmul %0, %arg11, %cst_17 {dimension_numbers = #tpu.dot_dimension_numbers<[1], [0], [0], [1], [0, 0, 1, 1], [], []>} : vector<256x256xf32>, vector<256x128xf32>, vector<256x128xf32> -> vector<256x128xf32>
      %33 = arith.addf %32, %31 : vector<256x128xf32>
      %34 = vector.extract_strided_slice %33 {offsets = [0, 0], sizes = [128, 128], strides = [1, 1]} : vector<256x128xf32> to vector<128x128xf32>
      %35 = vector.extract_strided_slice %33 {offsets = [128, 0], sizes = [128, 128], strides = [1, 1]} : vector<256x128xf32> to vector<128x128xf32>
      %36 = arith.mulf %34, %34 : vector<128x128xf32>
      %37 = arith.mulf %35, %35 : vector<128x128xf32>
      %38 = arith.addf %36, %37 : vector<128x128xf32>
      %cst_18 = arith.constant 9.99999996E-13 : f32
      %39 = vector.broadcast %cst_18 : f32 to vector<128x128xf32>
      %40 = arith.addf %38, %39 : vector<128x128xf32>
      %41 = math.rsqrt %40 : vector<128x128xf32>
      %42 = arith.mulf %38, %41 : vector<128x128xf32>
      %43 = arith.addf %42, %10 : vector<128x128xf32>
      %cst_19 = arith.constant 0.000000e+00 : f32
      %44 = vector.broadcast %cst_19 : f32 to vector<128x128xf32>
      %45 = arith.maximumf %43, %44 : vector<128x128xf32>
      %46 = arith.mulf %45, %41 : vector<128x128xf32>
      %47 = arith.mulf %46, %34 : vector<128x128xf32>
      %48 = arith.mulf %46, %35 : vector<128x128xf32>
      %49 = tpu.concatenate %47, %48 in 0 : vector<128x128xf32>, vector<128x128xf32> -> vector<256x128xf32>
      scf.yield %49 : vector<256x128xf32>
    }
    %c12_i32_13 = arith.constant 12 : i32
    %cst = arith.constant dense<0.000000e+00> : vector<32x128xf32>
    %19 = tpu.matmul %1, %18, %cst {dimension_numbers = #tpu.dot_dimension_numbers<[1], [0], [0], [1], [0, 0, 1, 1], [], []>} : vector<32x256xf32>, vector<256x128xf32>, vector<32x128xf32> -> vector<32x128xf32>
    %20 = arith.addf %19, %13 : vector<32x128xf32>
    %21 = vector.extract_strided_slice %20 {offsets = [0, 0], sizes = [16, 128], strides = [1, 1]} : vector<32x128xf32> to vector<16x128xf32>
    %22 = vector.extract_strided_slice %20 {offsets = [16, 0], sizes = [16, 128], strides = [1, 1]} : vector<32x128xf32> to vector<16x128xf32>
    %23 = arith.mulf %21, %21 : vector<16x128xf32>
    %24 = arith.mulf %22, %22 : vector<16x128xf32>
    %25 = arith.addf %23, %24 : vector<16x128xf32>
    %c0_14 = arith.constant 0 : index
    %c0_15 = arith.constant 0 : index
    %26 = vector.load %arg9[%c0_14, %c0_15] : memref<16x128xf32, #tpu.memory_space<vmem>>, vector<16x128xf32>
    tpu.vector_store %arg9[%c0_14, %c0_15], %25 {strides = array<i32>} : memref<16x128xf32, #tpu.memory_space<vmem>>, vector<16x128xf32>,
    return
  }
  func.func @transform_0(%arg0: i32) -> (i32, i32) {
    %c0_i32 = arith.constant 0 : i32
    %c0_i32_0 = arith.constant 0 : i32
    return %c0_i32, %arg0 : i32, i32
  }
  func.func @transform_1(%arg0: i32) -> (i32, i32) {
    %c0_i32 = arith.constant 0 : i32
    %c0_i32_0 = arith.constant 0 : i32
    %c0_i32_1 = arith.constant 0 : i32
    return %c0_i32, %c0_i32_0 : i32, i32
  }
  func.func @transform_2(%arg0: i32) -> (i32, i32) {
    %c0_i32 = arith.constant 0 : i32
    %c0_i32_0 = arith.constant 0 : i32
    %c0_i32_1 = arith.constant 0 : i32
    return %c0_i32, %c0_i32_0 : i32, i32
  }
  func.func @transform_3(%arg0: i32) -> (i32, i32) {
    %c0_i32 = arith.constant 0 : i32
    %c0_i32_0 = arith.constant 0 : i32
    %c0_i32_1 = arith.constant 0 : i32
    return %c0_i32, %c0_i32_0 : i32, i32
  }
  func.func @transform_4(%arg0: i32) -> (i32, i32) {
    %c0_i32 = arith.constant 0 : i32
    %c0_i32_0 = arith.constant 0 : i32
    %c0_i32_1 = arith.constant 0 : i32
    return %c0_i32, %c0_i32_0 : i32, i32
  }
  func.func @transform_5(%arg0: i32) -> (i32, i32) {
    %c0_i32 = arith.constant 0 : i32
    %c0_i32_0 = arith.constant 0 : i32
    %c0_i32_1 = arith.constant 0 : i32
    return %c0_i32, %c0_i32_0 : i32, i32
  }
  func.func @transform_6(%arg0: i32) -> (i32, i32) {
    %c0_i32 = arith.constant 0 : i32
    %c0_i32_0 = arith.constant 0 : i32
    %c0_i32_1 = arith.constant 0 : i32
    return %c0_i32, %c0_i32_0 : i32, i32
  }
  func.func @transform_7(%arg0: i32) -> (i32, i32) {
    %c0_i32 = arith.constant 0 : i32
    %c0_i32_0 = arith.constant 0 : i32
    %c0_i32_1 = arith.constant 0 : i32
    return %c0_i32, %c0_i32_0 : i32, i32
  }
  func.func @transform_8(%arg0: i32) -> (i32, i32) {
    %c0_i32 = arith.constant 0 : i32
    %c0_i32_0 = arith.constant 0 : i32
    return %c0_i32, %arg0 : i32, i32
  }
}

</mosaic_0001>

<llo_original>
// kernel: tpu_custom_call.1
$region0: #{tpu_custom_call.1}
  #allocation0 [shape = 'u32[]', space=smem, size = 0x4, offset = 0x4, fixed_abs, tag = 'smem constant byte address 0x4 - core index']
  #allocation1 [shape = 'u32[72,128]{1,0:T(1,128)}', space=vmem, size = 0x9000, scoped, tag = 'internal scratch']
  %s0 = inlined_call_operand.vmem [shape: f32[16,128], index: 0, kind: input, shape index: {}]
  %s1 = inlined_call_operand.vmem [shape: f32[256,256], index: 1, kind: input, shape index: {}]
  %s2 = inlined_call_operand.vmem [shape: f32[256,1], index: 2, kind: input, shape index: {}]
  %s3 = inlined_call_operand.vmem [shape: f32[256,1], index: 3, kind: input, shape index: {}]
  %s4 = inlined_call_operand.vmem [shape: f32[128,1], index: 4, kind: input, shape index: {}]
  %s5 = inlined_call_operand.vmem [shape: f32[256,1], index: 5, kind: input, shape index: {}]
  %s6 = inlined_call_operand.vmem [shape: f32[32,256], index: 6, kind: input, shape index: {}]
  %s7 = inlined_call_operand.vmem [shape: f32[32,1], index: 7, kind: input, shape index: {}]
  %s8 = inlined_call_operand.hbm [shape: f32[16,128], index: 8, kind: output, shape index: {}]
  %s9 = sld [smem:[#allocation0]]
  $region49: #{tpu_custom_call.1} parent=0
    _
  %s11 = ssub.s32 1, %s9
  %s12 = scalar_select 0, %s11, %s9
  $region1: #{tpu_custom_call.1} parent=0
    #allocation2 [shape = 'u8[8192]{0}', space=vmem, size = 0x2000, scoped, tag = 'output window, operand 0, single buffered']
    #allocation3 [shape = 's32[1]{0}', space=sflag, size = 0x4, scoped, tag = 'scoped memory for tpu_custom_call.1']
    %13 = vsyncpa [#allocation3], 0
    // Predicated region
    $region2: #{tpu_custom_call.1} parent=1 // pred_check
      _
    $region3: #{tpu_custom_call.1} parent=1 // pred_check_branch
      %15 = sbr.rel (0) target = $region5
    $region4: #{tpu_custom_call.1} parent=1 // pred_region
      _
    $region5: #{tpu_custom_call.1} parent=1 // pred_fallthru
      _
    // Predicated region
    $region6: #{tpu_custom_call.1} parent=1 // pred_check
      _
    $region7: #{tpu_custom_call.1} parent=1 // pred_check_branch
      %17 = sbr.rel (0) target = $region9
    $region8: #{tpu_custom_call.1} parent=1 // pred_region
      _
    $region9: #{tpu_custom_call.1} parent=1 // pred_fallthru
      _
    // Predicated region
    $region10: #{tpu_custom_call.1} parent=1 // pred_check
      _
    $region11: #{tpu_custom_call.1} parent=1 // pred_check_branch
      %19 = sbr.rel (0) target = $region13
    $region12: #{tpu_custom_call.1} parent=1 // pred_region
      _
    $region13: #{tpu_custom_call.1} parent=1 // pred_fallthru
      _
    // Predicated region
    $region14: #{tpu_custom_call.1} parent=1 // pred_check
      _
    $region15: #{tpu_custom_call.1} parent=1 // pred_check_branch
      %21 = sbr.rel (0) target = $region17
    $region16: #{tpu_custom_call.1} parent=1 // pred_region
      _
    $region17: #{tpu_custom_call.1} parent=1 // pred_fallthru
      _
    // Predicated region
    $region18: #{tpu_custom_call.1} parent=1 // pred_check
      _
    $region19: #{tpu_custom_call.1} parent=1 // pred_check_branch
      %23 = sbr.rel (0) target = $region21
    $region20: #{tpu_custom_call.1} parent=1 // pred_region
      _
    $region21: #{tpu_custom_call.1} parent=1 // pred_fallthru
      _
    // Predicated region
    $region22: #{tpu_custom_call.1} parent=1 // pred_check
      _
    $region23: #{tpu_custom_call.1} parent=1 // pred_check_branch
      %25 = sbr.rel (0) target = $region25
    $region24: #{tpu_custom_call.1} parent=1 // pred_region
      _
    $region25: #{tpu_custom_call.1} parent=1 // pred_fallthru
      _
    // Predicated region
    $region26: #{tpu_custom_call.1} parent=1 // pred_check
      _
    $region27: #{tpu_custom_call.1} parent=1 // pred_check_branch
      %27 = sbr.rel (0) target = $region29
    $region28: #{tpu_custom_call.1} parent=1 // pred_region
      _
    $region29: #{tpu_custom_call.1} parent=1 // pred_fallthru
      _
    // Predicated region
    $region30: #{tpu_custom_call.1} parent=1 // pred_check
      _
    $region31: #{tpu_custom_call.1} parent=1 // pred_check_branch
      %29 = sbr.rel (0) target = $region33
    $region32: #{tpu_custom_call.1} parent=1 // pred_region
      _
    $region33: #{tpu_custom_call.1} parent=1 // pred_fallthru
      _
    %v30 = vld [vmem:[%s1] sm:$0xff]
    %v31 = vld [vmem:[%s1 + $0x8] sm:$0xff]
    %v32 = vld [vmem:[%s1 + $0x10] sm:$0xff]
    %v33 = vld [vmem:[%s1 + $0x18] sm:$0xff]
    %v34 = vld [vmem:[%s1 + $0x20] sm:$0xff]
    %v35 = vld [vmem:[%s1 + $0x28] sm:$0xff]
    %v36 = vld [vmem:[%s1 + $0x30] sm:$0xff]
    %v37 = vld [vmem:[%s1 + $0x38] sm:$0xff]
    %v38 = vld [vmem:[%s1 + $0x40] sm:$0xff]
    %v39 = vld [vmem:[%s1 + $0x48] sm:$0xff]
    %v40 = vld [vmem:[%s1 + $0x50] sm:$0xff]
    %v41 = vld [vmem:[%s1 + $0x58] sm:$0xff]
    %v42 = vld [vmem:[%s1 + $0x60] sm:$0xff]
    %v43 = vld [vmem:[%s1 + $0x68] sm:$0xff]
    %v44 = vld [vmem:[%s1 + $0x70] sm:$0xff]
    %v45 = vld [vmem:[%s1 + $0x78] sm:$0xff]
    %v46 = vld [vmem:[%s1 + $0x80] sm:$0xff]
    %v47 = vld [vmem:[%s1 + $0x88] sm:$0xff]
    %v48 = vld [vmem:[%s1 + $0x90] sm:$0xff]
    %v49 = vld [vmem:[%s1 + $0x98] sm:$0xff]
    %v50 = vld [vmem:[%s1 + $0xa0] sm:$0xff]
    %v51 = vld [vmem:[%s1 + $0xa8] sm:$0xff]
    %v52 = vld [vmem:[%s1 + $0xb0] sm:$0xff]
    %v53 = vld [vmem:[%s1 + $0xb8] sm:$0xff]
    %v54 = vld [vmem:[%s1 + $0xc0] sm:$0xff]
    %v55 = vld [vmem:[%s1 + $0xc8] sm:$0xff]
    %v56 = vld [vmem:[%s1 + $0xd0] sm:$0xff]
    %v57 = vld [vmem:[%s1 + $0xd8] sm:$0xff]
    %v58 = vld [vmem:[%s1 + $0xe0] sm:$0xff]
    %v59 = vld [vmem:[%s1 + $0xe8] sm:$0xff]
    %v60 = vld [vmem:[%s1 + $0xf0] sm:$0xff]
    %v61 = vld [vmem:[%s1 + $0xf8] sm:$0xff]
    %v62 = vld [vmem:[%s1 + $0x100] sm:$0xff]
    %v63 = vld [vmem:[%s1 + $0x108] sm:$0xff]
    %v64 = vld [vmem:[%s1 + $0x110] sm:$0xff]
    %v65 = vld [vmem:[%s1 + $0x118] sm:$0xff]
    %v66 = vld [vmem:[%s1 + $0x120] sm:$0xff]
    %v67 = vld [vmem:[%s1 + $0x128] sm:$0xff]
    %v68 = vld [vmem:[%s1 + $0x130] sm:$0xff]
    %v69 = vld [vmem:[%s1 + $0x138] sm:$0xff]
    %v70 = vld [vmem:[%s1 + $0x140] sm:$0xff]
    %v71 = vld [vmem:[%s1 + $0x148] sm:$0xff]
    %v72 = vld [vmem:[%s1 + $0x150] sm:$0xff]
    %v73 = vld [vmem:[%s1 + $0x158] sm:$0xff]
    %v74 = vld [vmem:[%s1 + $0x160] sm:$0xff]
    %v75 = vld [vmem:[%s1 + $0x168] sm:$0xff]
    %v76 = vld [vmem:[%s1 + $0x170] sm:$0xff]
    %v77 = vld [vmem:[%s1 + $0x178] sm:$0xff]
    %v78 = vld [vmem:[%s1 + $0x180] sm:$0xff]
    %v79 = vld [vmem:[%s1 + $0x188] sm:$0xff]
    %v80 = vld [vmem:[%s1 + $0x190] sm:$0xff]
    %v81 = vld [vmem:[%s1 + $0x198] sm:$0xff]
    %v82 = vld [vmem:[%s1 + $0x1a0] sm:$0xff]
    %v83 = vld [vmem:[%s1 + $0x1a8] sm:$0xff]
    %v84 = vld [vmem:[%s1 + $0x1b0] sm:$0xff]
    %v85 = vld [vmem:[%s1 + $0x1b8] sm:$0xff]
    %v86 = vld [vmem:[%s1 + $0x1c0] sm:$0xff]
    %v87 = vld [vmem:[%s1 + $0x1c8] sm:$0xff]
    %v88 = vld [vmem:[%s1 + $0x1d0] sm:$0xff]
    %v89 = vld [vmem:[%s1 + $0x1d8] sm:$0xff]
    %v90 = vld [vmem:[%s1 + $0x1e0] sm:$0xff]
    %v91 = vld [vmem:[%s1 + $0x1e8] sm:$0xff]
    %v92 = vld [vmem:[%s1 + $0x1f0] sm:$0xff]
    %v93 = vld [vmem:[%s1 + $0x1f8] sm:$0xff]
    %v94 = vld [vmem:[%s6] sm:$0xff]
    %v95 = vld [vmem:[%s6 + $0x8] sm:$0xff]
    %v96 = vld [vmem:[%s6 + $0x10] sm:$0xff]
    %v97 = vld [vmem:[%s6 + $0x18] sm:$0xff]
    %v98 = vld [vmem:[%s6 + $0x20] sm:$0xff]
    %v99 = vld [vmem:[%s6 + $0x28] sm:$0xff]
    %v100 = vld [vmem:[%s6 + $0x30] sm:$0xff]
    %v101 = vld [vmem:[%s6 + $0x38] sm:$0xff]
    %v102 = vld [vmem:[%s2] sm:$0xff]
    %v103 = vld [vmem:[%s2 + $0x8] sm:$0xff]
    %v104 = vld [vmem:[%s2 + $0x10] sm:$0xff]
    %v105 = vld [vmem:[%s2 + $0x18] sm:$0xff]
    %v106 = vld [vmem:[%s2 + $0x20] sm:$0xff]
    %v107 = vld [vmem:[%s2 + $0x28] sm:$0xff]
    %v108 = vld [vmem:[%s2 + $0x30] sm:$0xff]
    %v109 = vld [vmem:[%s2 + $0x38] sm:$0xff]
    %v110 = vld [vmem:[%s2 + $0x40] sm:$0xff]
    %v111 = vld [vmem:[%s2 + $0x48] sm:$0xff]
    %v112 = vld [vmem:[%s2 + $0x50] sm:$0xff]
    %v113 = vld [vmem:[%s2 + $0x58] sm:$0xff]
    %v114 = vld [vmem:[%s2 + $0x60] sm:$0xff]
    %v115 = vld [vmem:[%s2 + $0x68] sm:$0xff]
    %v116 = vld [vmem:[%s2 + $0x70] sm:$0xff]
    %v117 = vld [vmem:[%s2 + $0x78] sm:$0xff]
    %v118 = vld [vmem:[%s2 + $0x80] sm:$0xff]
    %v119 = vld [vmem:[%s2 + $0x88] sm:$0xff]
    %v120 = vld [vmem:[%s2 + $0x90] sm:$0xff]
    %v121 = vld [vmem:[%s2 + $0x98] sm:$0xff]
    %v122 = vld [vmem:[%s2 + $0xa0] sm:$0xff]
    %v123 = vld [vmem:[%s2 + $0xa8] sm:$0xff]
    %v124 = vld [vmem:[%s2 + $0xb0] sm:$0xff]
    %v125 = vld [vmem:[%s2 + $0xb8] sm:$0xff]
    %v126 = vld [vmem:[%s2 + $0xc0] sm:$0xff]
    %v127 = vld [vmem:[%s2 + $0xc8] sm:$0xff]
    %v128 = vld [vmem:[%s2 + $0xd0] sm:$0xff]
    %v129 = vld [vmem:[%s2 + $0xd8] sm:$0xff]
    %v130 = vld [vmem:[%s2 + $0xe0] sm:$0xff]
    %v131 = vld [vmem:[%s2 + $0xe8] sm:$0xff]
    %v132 = vld [vmem:[%s2 + $0xf0] sm:$0xff]
    %v133 = vld [vmem:[%s2 + $0xf8] sm:$0xff]
    %135 = vset.pattern.permute.xlu0 0
    %136 = vperm.xlu0 %135, %v102
    %v137 = vpop.permute.xlu0 %136
    %140 = vset.pattern.permute.xlu0 0
    %141 = vperm.xlu0 %140, %v103
    %v142 = vpop.permute.xlu0 %141
    %145 = vset.pattern.permute.xlu0 0
    %146 = vperm.xlu0 %145, %v104
    %v147 = vpop.permute.xlu0 %146
    %150 = vset.pattern.permute.xlu0 0
    %151 = vperm.xlu0 %150, %v105
    %v152 = vpop.permute.xlu0 %151
    %155 = vset.pattern.permute.xlu0 0
    %156 = vperm.xlu0 %155, %v106
    %v157 = vpop.permute.xlu0 %156
    %160 = vset.pattern.permute.xlu0 0
    %161 = vperm.xlu0 %160, %v107
    %v162 = vpop.permute.xlu0 %161
    %165 = vset.pattern.permute.xlu0 0
    %166 = vperm.xlu0 %165, %v108
    %v167 = vpop.permute.xlu0 %166
    %170 = vset.pattern.permute.xlu0 0
    %171 = vperm.xlu0 %170, %v109
    %v172 = vpop.permute.xlu0 %171
    %175 = vset.pattern.permute.xlu0 0
    %176 = vperm.xlu0 %175, %v110
    %v177 = vpop.permute.xlu0 %176
    %180 = vset.pattern.permute.xlu0 0
    %181 = vperm.xlu0 %180, %v111
    %v182 = vpop.permute.xlu0 %181
    %185 = vset.pattern.permute.xlu0 0
    %186 = vperm.xlu0 %185, %v112
    %v187 = vpop.permute.xlu0 %186
    %190 = vset.pattern.permute.xlu0 0
    %191 = vperm.xlu0 %190, %v113
    %v192 = vpop.permute.xlu0 %191
    %195 = vset.pattern.permute.xlu0 0
    %196 = vperm.xlu0 %195, %v114
    %v197 = vpop.permute.xlu0 %196
    %200 = vset.pattern.permute.xlu0 0
    %201 = vperm.xlu0 %200, %v115
    %v202 = vpop.permute.xlu0 %201
    %205 = vset.pattern.permute.xlu0 0
    %206 = vperm.xlu0 %205, %v116
    %v207 = vpop.permute.xlu0 %206
    %210 = vset.pattern.permute.xlu0 0
    %211 = vperm.xlu0 %210, %v117
    %v212 = vpop.permute.xlu0 %211
    %215 = vset.pattern.permute.xlu0 0
    %216 = vperm.xlu0 %215, %v118
    %v217 = vpop.permute.xlu0 %216
    %220 = vset.pattern.permute.xlu0 0
    %221 = vperm.xlu0 %220, %v119
    %v222 = vpop.permute.xlu0 %221
    %225 = vset.pattern.permute.xlu0 0
    %226 = vperm.xlu0 %225, %v120
    %v227 = vpop.permute.xlu0 %226
    %230 = vset.pattern.permute.xlu0 0
    %231 = vperm.xlu0 %230, %v121
    %v232 = vpop.permute.xlu0 %231
    %235 = vset.pattern.permute.xlu0 0
    %236 = vperm.xlu0 %235, %v122
    %v237 = vpop.permute.xlu0 %236
    %240 = vset.pattern.permute.xlu0 0
    %241 = vperm.xlu0 %240, %v123
    %v242 = vpop.permute.xlu0 %241
    %245 = vset.pattern.permute.xlu0 0
    %246 = vperm.xlu0 %245, %v124
    %v247 = vpop.permute.xlu0 %246
    %250 = vset.pattern.permute.xlu0 0
    %251 = vperm.xlu0 %250, %v125
    %v252 = vpop.permute.xlu0 %251
    %255 = vset.pattern.permute.xlu0 0
    %256 = vperm.xlu0 %255, %v126
    %v257 = vpop.permute.xlu0 %256
    %260 = vset.pattern.permute.xlu0 0
    %261 = vperm.xlu0 %260, %v127
    %v262 = vpop.permute.xlu0 %261
    %265 = vset.pattern.permute.xlu0 0
    %266 = vperm.xlu0 %265, %v128
    %v267 = vpop.permute.xlu0 %266
    %270 = vset.pattern.permute.xlu0 0
    %271 = vperm.xlu0 %270, %v129
    %v272 = vpop.permute.xlu0 %271
    %275 = vset.pattern.permute.xlu0 0
    %276 = vperm.xlu0 %275, %v130
    %v277 = vpop.permute.xlu0 %276
    %280 = vset.pattern.permute.xlu0 0
    %281 = vperm.xlu0 %280, %v131
    %v282 = vpop.permute.xlu0 %281
    %285 = vset.pattern.permute.xlu0 0
    %286 = vperm.xlu0 %285, %v132
    %v287 = vpop.permute.xlu0 %286
    %290 = vset.pattern.permute.xlu0 0
    %291 = vperm.xlu0 %290, %v133
    %v292 = vpop.permute.xlu0 %291
    %v294 = vld [vmem:[%s3] sm:$0xff]
    %v295 = vld [vmem:[%s3 + $0x8] sm:$0xff]
    %v296 = vld [vmem:[%s3 + $0x10] sm:$0xff]
    %v297 = vld [vmem:[%s3 + $0x18] sm:$0xff]
    %v298 = vld [vmem:[%s3 + $0x20] sm:$0xff]
    %v299 = vld [vmem:[%s3 + $0x28] sm:$0xff]
    %v300 = vld [vmem:[%s3 + $0x30] sm:$0xff]
    %v301 = vld [vmem:[%s3 + $0x38] sm:$0xff]
    %v302 = vld [vmem:[%s3 + $0x40] sm:$0xff]
    %v303 = vld [vmem:[%s3 + $0x48] sm:$0xff]
    %v304 = vld [vmem:[%s3 + $0x50] sm:$0xff]
    %v305 = vld [vmem:[%s3 + $0x58] sm:$0xff]
    %v306 = vld [vmem:[%s3 + $0x60] sm:$0xff]
    %v307 = vld [vmem:[%s3 + $0x68] sm:$0xff]
    %v308 = vld [vmem:[%s3 + $0x70] sm:$0xff]
    %v309 = vld [vmem:[%s3 + $0x78] sm:$0xff]
    %v310 = vld [vmem:[%s3 + $0x80] sm:$0xff]
    %v311 = vld [vmem:[%s3 + $0x88] sm:$0xff]
    %v312 = vld [vmem:[%s3 + $0x90] sm:$0xff]
    %v313 = vld [vmem:[%s3 + $0x98] sm:$0xff]
    %v314 = vld [vmem:[%s3 + $0xa0] sm:$0xff]
    %v315 = vld [vmem:[%s3 + $0xa8] sm:$0xff]
    %v316 = vld [vmem:[%s3 + $0xb0] sm:$0xff]
    %v317 = vld [vmem:[%s3 + $0xb8] sm:$0xff]
    %v318 = vld [vmem:[%s3 + $0xc0] sm:$0xff]
    %v319 = vld [vmem:[%s3 + $0xc8] sm:$0xff]
    %v320 = vld [vmem:[%s3 + $0xd0] sm:$0xff]
    %v321 = vld [vmem:[%s3 + $0xd8] sm:$0xff]
    %v322 = vld [vmem:[%s3 + $0xe0] sm:$0xff]
    %v323 = vld [vmem:[%s3 + $0xe8] sm:$0xff]
    %v324 = vld [vmem:[%s3 + $0xf0] sm:$0xff]
    %v325 = vld [vmem:[%s3 + $0xf8] sm:$0xff]
    %327 = vset.pattern.permute.xlu0 0
    %328 = vperm.xlu0 %327, %v294
    %v329 = vpop.permute.xlu0 %328
    %332 = vset.pattern.permute.xlu0 0
    %333 = vperm.xlu0 %332, %v295
    %v334 = vpop.permute.xlu0 %333
    %337 = vset.pattern.permute.xlu0 0
    %338 = vperm.xlu0 %337, %v296
    %v339 = vpop.permute.xlu0 %338
    %342 = vset.pattern.permute.xlu0 0
    %343 = vperm.xlu0 %342, %v297
    %v344 = vpop.permute.xlu0 %343
    %347 = vset.pattern.permute.xlu0 0
    %348 = vperm.xlu0 %347, %v298
    %v349 = vpop.permute.xlu0 %348
    %352 = vset.pattern.permute.xlu0 0
    %353 = vperm.xlu0 %352, %v299
    %v354 = vpop.permute.xlu0 %353
    %357 = vset.pattern.permute.xlu0 0
    %358 = vperm.xlu0 %357, %v300
    %v359 = vpop.permute.xlu0 %358
    %362 = vset.pattern.permute.xlu0 0
    %363 = vperm.xlu0 %362, %v301
    %v364 = vpop.permute.xlu0 %363
    %367 = vset.pattern.permute.xlu0 0
    %368 = vperm.xlu0 %367, %v302
    %v369 = vpop.permute.xlu0 %368
    %372 = vset.pattern.permute.xlu0 0
    %373 = vperm.xlu0 %372, %v303
    %v374 = vpop.permute.xlu0 %373
    %377 = vset.pattern.permute.xlu0 0
    %378 = vperm.xlu0 %377, %v304
    %v379 = vpop.permute.xlu0 %378
    %382 = vset.pattern.permute.xlu0 0
    %383 = vperm.xlu0 %382, %v305
    %v384 = vpop.permute.xlu0 %383
    %387 = vset.pattern.permute.xlu0 0
    %388 = vperm.xlu0 %387, %v306
    %v389 = vpop.permute.xlu0 %388
    %392 = vset.pattern.permute.xlu0 0
    %393 = vperm.xlu0 %392, %v307
    %v394 = vpop.permute.xlu0 %393
    %397 = vset.pattern.permute.xlu0 0
    %398 = vperm.xlu0 %397, %v308
    %v399 = vpop.permute.xlu0 %398
    %402 = vset.pattern.permute.xlu0 0
    %403 = vperm.xlu0 %402, %v309
    %v404 = vpop.permute.xlu0 %403
    %407 = vset.pattern.permute.xlu0 0
    %408 = vperm.xlu0 %407, %v310
    %v409 = vpop.permute.xlu0 %408
    %412 = vset.pattern.permute.xlu0 0
    %413 = vperm.xlu0 %412, %v311
    %v414 = vpop.permute.xlu0 %413
    %417 = vset.pattern.permute.xlu0 0
    %418 = vperm.xlu0 %417, %v312
    %v419 = vpop.permute.xlu0 %418
    %422 = vset.pattern.permute.xlu0 0
    %423 = vperm.xlu0 %422, %v313
    %v424 = vpop.permute.xlu0 %423
    %427 = vset.pattern.permute.xlu0 0
    %428 = vperm.xlu0 %427, %v314
    %v429 = vpop.permute.xlu0 %428
    %432 = vset.pattern.permute.xlu0 0
    %433 = vperm.xlu0 %432, %v315
    %v434 = vpop.permute.xlu0 %433
    %437 = vset.pattern.permute.xlu0 0
    %438 = vperm.xlu0 %437, %v316
    %v439 = vpop.permute.xlu0 %438
    %442 = vset.pattern.permute.xlu0 0
    %443 = vperm.xlu0 %442, %v317
    %v444 = vpop.permute.xlu0 %443
    %447 = vset.pattern.permute.xlu0 0
    %448 = vperm.xlu0 %447, %v318
    %v449 = vpop.permute.xlu0 %448
    %452 = vset.pattern.permute.xlu0 0
    %453 = vperm.xlu0 %452, %v319
    %v454 = vpop.permute.xlu0 %453
    %457 = vset.pattern.permute.xlu0 0
    %458 = vperm.xlu0 %457, %v320
    %v459 = vpop.permute.xlu0 %458
    %462 = vset.pattern.permute.xlu0 0
    %463 = vperm.xlu0 %462, %v321
    %v464 = vpop.permute.xlu0 %463
    %467 = vset.pattern.permute.xlu0 0
    %468 = vperm.xlu0 %467, %v322
    %v469 = vpop.permute.xlu0 %468
    %472 = vset.pattern.permute.xlu0 0
    %473 = vperm.xlu0 %472, %v323
    %v474 = vpop.permute.xlu0 %473
    %477 = vset.pattern.permute.xlu0 0
    %478 = vperm.xlu0 %477, %v324
    %v479 = vpop.permute.xlu0 %478
    %482 = vset.pattern.permute.xlu0 0
    %483 = vperm.xlu0 %482, %v325
    %v484 = vpop.permute.xlu0 %483
    %v486 = vld [vmem:[%s4] sm:$0xff]
    %v487 = vld [vmem:[%s4 + $0x8] sm:$0xff]
    %v488 = vld [vmem:[%s4 + $0x10] sm:$0xff]
    %v489 = vld [vmem:[%s4 + $0x18] sm:$0xff]
    %v490 = vld [vmem:[%s4 + $0x20] sm:$0xff]
    %v491 = vld [vmem:[%s4 + $0x28] sm:$0xff]
    %v492 = vld [vmem:[%s4 + $0x30] sm:$0xff]
    %v493 = vld [vmem:[%s4 + $0x38] sm:$0xff]
    %v494 = vld [vmem:[%s4 + $0x40] sm:$0xff]
    %v495 = vld [vmem:[%s4 + $0x48] sm:$0xff]
    %v496 = vld [vmem:[%s4 + $0x50] sm:$0xff]
    %v497 = vld [vmem:[%s4 + $0x58] sm:$0xff]
    %v498 = vld [vmem:[%s4 + $0x60] sm:$0xff]
    %v499 = vld [vmem:[%s4 + $0x68] sm:$0xff]
    %v500 = vld [vmem:[%s4 + $0x70] sm:$0xff]
    %v501 = vld [vmem:[%s4 + $0x78] sm:$0xff]
    %503 = vset.pattern.permute.xlu0 0
    %504 = vperm.xlu0 %503, %v486
    %v505 = vpop.permute.xlu0 %504
    %508 = vset.pattern.permute.xlu0 0
    %509 = vperm.xlu0 %508, %v487
    %v510 = vpop.permute.xlu0 %509
    %513 = vset.pattern.permute.xlu0 0
    %514 = vperm.xlu0 %513, %v488
    %v515 = vpop.permute.xlu0 %514
    %518 = vset.pattern.permute.xlu0 0
    %519 = vperm.xlu0 %518, %v489
    %v520 = vpop.permute.xlu0 %519
    %523 = vset.pattern.permute.xlu0 0
    %524 = vperm.xlu0 %523, %v490
    %v525 = vpop.permute.xlu0 %524
    %528 = vset.pattern.permute.xlu0 0
    %529 = vperm.xlu0 %528, %v491
    %v530 = vpop.permute.xlu0 %529
    %533 = vset.pattern.permute.xlu0 0
    %534 = vperm.xlu0 %533, %v492
    %v535 = vpop.permute.xlu0 %534
    %538 = vset.pattern.permute.xlu0 0
    %539 = vperm.xlu0 %538, %v493
    %v540 = vpop.permute.xlu0 %539
    %543 = vset.pattern.permute.xlu0 0
    %544 = vperm.xlu0 %543, %v494
    %v545 = vpop.permute.xlu0 %544
    %548 = vset.pattern.permute.xlu0 0
    %549 = vperm.xlu0 %548, %v495
    %v550 = vpop.permute.xlu0 %549
    %553 = vset.pattern.permute.xlu0 0
    %554 = vperm.xlu0 %553, %v496
    %v555 = vpop.permute.xlu0 %554
    %558 = vset.pattern.permute.xlu0 0
    %559 = vperm.xlu0 %558, %v497
    %v560 = vpop.permute.xlu0 %559
    %563 = vset.pattern.permute.xlu0 0
    %564 = vperm.xlu0 %563, %v498
    %v565 = vpop.permute.xlu0 %564
    %568 = vset.pattern.permute.xlu0 0
    %569 = vperm.xlu0 %568, %v499
    %v570 = vpop.permute.xlu0 %569
    %573 = vset.pattern.permute.xlu0 0
    %574 = vperm.xlu0 %573, %v500
    %v575 = vpop.permute.xlu0 %574
    %578 = vset.pattern.permute.xlu0 0
    %579 = vperm.xlu0 %578, %v501
    %v580 = vpop.permute.xlu0 %579
    %v582 = vld [vmem:[%s7] sm:$0xff]
    %v583 = vld [vmem:[%s7 + $0x8] sm:$0xff]
    %v584 = vld [vmem:[%s7 + $0x10] sm:$0xff]
    %v585 = vld [vmem:[%s7 + $0x18] sm:$0xff]
    %587 = vset.pattern.permute.xlu0 0
    %588 = vperm.xlu0 %587, %v582
    %v589 = vpop.permute.xlu0 %588
    %592 = vset.pattern.permute.xlu0 0
    %593 = vperm.xlu0 %592, %v583
    %v594 = vpop.permute.xlu0 %593
    %597 = vset.pattern.permute.xlu0 0
    %598 = vperm.xlu0 %597, %v584
    %v599 = vpop.permute.xlu0 %598
    %602 = vset.pattern.permute.xlu0 0
    %603 = vperm.xlu0 %602, %v585
    %v604 = vpop.permute.xlu0 %603
    %v606 = vld [vmem:[%s5] sm:$0xff]
    %v607 = vld [vmem:[%s5 + $0x8] sm:$0xff]
    %v608 = vld [vmem:[%s5 + $0x10] sm:$0xff]
    %v609 = vld [vmem:[%s5 + $0x18] sm:$0xff]
    %v610 = vld [vmem:[%s5 + $0x20] sm:$0xff]
    %v611 = vld [vmem:[%s5 + $0x28] sm:$0xff]
    %v612 = vld [vmem:[%s5 + $0x30] sm:$0xff]
    %v613 = vld [vmem:[%s5 + $0x38] sm:$0xff]
    %v614 = vld [vmem:[%s5 + $0x40] sm:$0xff]
    %v615 = vld [vmem:[%s5 + $0x48] sm:$0xff]
    %v616 = vld [vmem:[%s5 + $0x50] sm:$0xff]
    %v617 = vld [vmem:[%s5 + $0x58] sm:$0xff]
    %v618 = vld [vmem:[%s5 + $0x60] sm:$0xff]
    %v619 = vld [vmem:[%s5 + $0x68] sm:$0xff]
    %v620 = vld [vmem:[%s5 + $0x70] sm:$0xff]
    %v621 = vld [vmem:[%s5 + $0x78] sm:$0xff]
    %v622 = vld [vmem:[%s5 + $0x80] sm:$0xff]
    %v623 = vld [vmem:[%s5 + $0x88] sm:$0xff]
    %v624 = vld [vmem:[%s5 + $0x90] sm:$0xff]
    %v625 = vld [vmem:[%s5 + $0x98] sm:$0xff]
    %v626 = vld [vmem:[%s5 + $0xa0] sm:$0xff]
    %v627 = vld [vmem:[%s5 + $0xa8] sm:$0xff]
    %v628 = vld [vmem:[%s5 + $0xb0] sm:$0xff]
    %v629 = vld [vmem:[%s5 + $0xb8] sm:$0xff]
    %v630 = vld [vmem:[%s5 + $0xc0] sm:$0xff]
    %v631 = vld [vmem:[%s5 + $0xc8] sm:$0xff]
    %v632 = vld [vmem:[%s5 + $0xd0] sm:$0xff]
    %v633 = vld [vmem:[%s5 + $0xd8] sm:$0xff]
    %v634 = vld [vmem:[%s5 + $0xe0] sm:$0xff]
    %v635 = vld [vmem:[%s5 + $0xe8] sm:$0xff]
    %v636 = vld [vmem:[%s5 + $0xf0] sm:$0xff]
    %v637 = vld [vmem:[%s5 + $0xf8] sm:$0xff]
    %639 = vset.pattern.permute.xlu0 0
    %640 = vperm.xlu0 %639, %v606
    %v641 = vpop.permute.xlu0 %640
    %644 = vset.pattern.permute.xlu0 0
    %645 = vperm.xlu0 %644, %v607
    %v646 = vpop.permute.xlu0 %645
    %649 = vset.pattern.permute.xlu0 0
    %650 = vperm.xlu0 %649, %v608
    %v651 = vpop.permute.xlu0 %650
    %654 = vset.pattern.permute.xlu0 0
    %655 = vperm.xlu0 %654, %v609
    %v656 = vpop.permute.xlu0 %655
    %659 = vset.pattern.permute.xlu0 0
    %660 = vperm.xlu0 %659, %v610
    %v661 = vpop.permute.xlu0 %660
    %664 = vset.pattern.permute.xlu0 0
    %665 = vperm.xlu0 %664, %v611
    %v666 = vpop.permute.xlu0 %665
    %669 = vset.pattern.permute.xlu0 0
    %670 = vperm.xlu0 %669, %v612
    %v671 = vpop.permute.xlu0 %670
    %674 = vset.pattern.permute.xlu0 0
    %675 = vperm.xlu0 %674, %v613
    %v676 = vpop.permute.xlu0 %675
    %679 = vset.pattern.permute.xlu0 0
    %680 = vperm.xlu0 %679, %v614
    %v681 = vpop.permute.xlu0 %680
    %684 = vset.pattern.permute.xlu0 0
    %685 = vperm.xlu0 %684, %v615
    %v686 = vpop.permute.xlu0 %685
    %689 = vset.pattern.permute.xlu0 0
    %690 = vperm.xlu0 %689, %v616
    %v691 = vpop.permute.xlu0 %690
    %694 = vset.pattern.permute.xlu0 0
    %695 = vperm.xlu0 %694, %v617
    %v696 = vpop.permute.xlu0 %695
    %699 = vset.pattern.permute.xlu0 0
    %700 = vperm.xlu0 %699, %v618
    %v701 = vpop.permute.xlu0 %700
    %704 = vset.pattern.permute.xlu0 0
    %705 = vperm.xlu0 %704, %v619
    %v706 = vpop.permute.xlu0 %705
    %709 = vset.pattern.permute.xlu0 0
    %710 = vperm.xlu0 %709, %v620
    %v711 = vpop.permute.xlu0 %710
    %714 = vset.pattern.permute.xlu0 0
    %715 = vperm.xlu0 %714, %v621
    %v716 = vpop.permute.xlu0 %715
    %719 = vset.pattern.permute.xlu0 0
    %720 = vperm.xlu0 %719, %v622
    %v721 = vpop.permute.xlu0 %720
    %724 = vset.pattern.permute.xlu0 0
    %725 = vperm.xlu0 %724, %v623
    %v726 = vpop.permute.xlu0 %725
    %729 = vset.pattern.permute.xlu0 0
    %730 = vperm.xlu0 %729, %v624
    %v731 = vpop.permute.xlu0 %730
    %734 = vset.pattern.permute.xlu0 0
    %735 = vperm.xlu0 %734, %v625
    %v736 = vpop.permute.xlu0 %735
    %739 = vset.pattern.permute.xlu0 0
    %740 = vperm.xlu0 %739, %v626
    %v741 = vpop.permute.xlu0 %740
    %744 = vset.pattern.permute.xlu0 0
    %745 = vperm.xlu0 %744, %v627
    %v746 = vpop.permute.xlu0 %745
    %749 = vset.pattern.permute.xlu0 0
    %750 = vperm.xlu0 %749, %v628
    %v751 = vpop.permute.xlu0 %750
    %754 = vset.pattern.permute.xlu0 0
    %755 = vperm.xlu0 %754, %v629
    %v756 = vpop.permute.xlu0 %755
    %759 = vset.pattern.permute.xlu0 0
    %760 = vperm.xlu0 %759, %v630
    %v761 = vpop.permute.xlu0 %760
    %764 = vset.pattern.permute.xlu0 0
    %765 = vperm.xlu0 %764, %v631
    %v766 = vpop.permute.xlu0 %765
    %769 = vset.pattern.permute.xlu0 0
    %770 = vperm.xlu0 %769, %v632
    %v771 = vpop.permute.xlu0 %770
    %774 = vset.pattern.permute.xlu0 0
    %775 = vperm.xlu0 %774, %v633
    %v776 = vpop.permute.xlu0 %775
    %779 = vset.pattern.permute.xlu0 0
    %780 = vperm.xlu0 %779, %v634
    %v781 = vpop.permute.xlu0 %780
    %784 = vset.pattern.permute.xlu0 0
    %785 = vperm.xlu0 %784, %v635
    %v786 = vpop.permute.xlu0 %785
    %789 = vset.pattern.permute.xlu0 0
    %790 = vperm.xlu0 %789, %v636
    %v791 = vpop.permute.xlu0 %790
    %794 = vset.pattern.permute.xlu0 0
    %795 = vperm.xlu0 %794, %v637
    %v796 = vpop.permute.xlu0 %795
    loop: start=0, step=1, limit=12
    $region34: #{tpu_custom_call.1} parent=1 // loop_pre_header
      _
    $region35: #{tpu_custom_call.1} parent=1 // loop_header
      %s799 = sphi 0, %s803
      %p800 = scmp.ge.s32.totalorder %s799, 12
      %v804 = vphi %v641, %v1417
      %v805 = vphi %v646, %v1418
      %v806 = vphi %v651, %v1419
      %v807 = vphi %v656, %v1420
      %v808 = vphi %v661, %v1421
      %v809 = vphi %v666, %v1422
      %v810 = vphi %v671, %v1423
      %v811 = vphi %v676, %v1424
      %v812 = vphi %v681, %v1425
      %v813 = vphi %v686, %v1426
      %v814 = vphi %v691, %v1427
      %v815 = vphi %v696, %v1428
      %v816 = vphi %v701, %v1429
      %v817 = vphi %v706, %v1430
      %v818 = vphi %v711, %v1431
      %v819 = vphi %v716, %v1432
      %v820 = vphi %v721, %v1433
      %v821 = vphi %v726, %v1434
      %v822 = vphi %v731, %v1435
      %v823 = vphi %v736, %v1436
      %v824 = vphi %v741, %v1437
      %v825 = vphi %v746, %v1438
      %v826 = vphi %v751, %v1439
      %v827 = vphi %v756, %v1440
      %v828 = vphi %v761, %v1441
      %v829 = vphi %v766, %v1442
      %v830 = vphi %v771, %v1443
      %v831 = vphi %v776, %v1444
      %v832 = vphi %v781, %v1445
      %v833 = vphi %v786, %v1446
      %v834 = vphi %v791, %v1447
      %v835 = vphi %v796, %v1448
    $region36: #{tpu_custom_call.1} parent=1 // loop_header_branch
      %802 = sbr.rel (%p800) target = $region40
    $region37: #{tpu_custom_call.1} parent=1 // loop_body
      %s836 = scalar_lea.vmem %s0, %s799
      %v837 = vld [vmem:[%s836] sm:$0x1]
      %v838 = vperm.slane %v837, 0
      %v839 = vmul.f32 %v137, %v838
      %v840 = vmul.f32 %v142, %v838
      %v841 = vmul.f32 %v147, %v838
      %v842 = vmul.f32 %v152, %v838
      %v843 = vmul.f32 %v157, %v838
      %v844 = vmul.f32 %v162, %v838
      %v845 = vmul.f32 %v167, %v838
      %v846 = vmul.f32 %v172, %v838
      %v847 = vmul.f32 %v177, %v838
      %v848 = vmul.f32 %v182, %v838
      %v849 = vmul.f32 %v187, %v838
      %v850 = vmul.f32 %v192, %v838
      %v851 = vmul.f32 %v197, %v838
      %v852 = vmul.f32 %v202, %v838
      %v853 = vmul.f32 %v207, %v838
      %v854 = vmul.f32 %v212, %v838
      %v855 = vmul.f32 %v217, %v838
      %v856 = vmul.f32 %v222, %v838
      %v857 = vmul.f32 %v227, %v838
      %v858 = vmul.f32 %v232, %v838
      %v859 = vmul.f32 %v237, %v838
      %v860 = vmul.f32 %v242, %v838
      %v861 = vmul.f32 %v247, %v838
      %v862 = vmul.f32 %v252, %v838
      %v863 = vmul.f32 %v257, %v838
      %v864 = vmul.f32 %v262, %v838
      %v865 = vmul.f32 %v267, %v838
      %v866 = vmul.f32 %v272, %v838
      %v867 = vmul.f32 %v277, %v838
      %v868 = vmul.f32 %v282, %v838
      %v869 = vmul.f32 %v287, %v838
      %v870 = vmul.f32 %v292, %v838
      %v871 = vadd.f32 %v839, %v329
      %v872 = vadd.f32 %v840, %v334
      %v873 = vadd.f32 %v841, %v339
      %v874 = vadd.f32 %v842, %v344
      %v875 = vadd.f32 %v843, %v349
      %v876 = vadd.f32 %v844, %v354
      %v877 = vadd.f32 %v845, %v359
      %v878 = vadd.f32 %v846, %v364
      %v879 = vadd.f32 %v847, %v369
      %v880 = vadd.f32 %v848, %v374
      %v881 = vadd.f32 %v849, %v379
      %v882 = vadd.f32 %v850, %v384
      %v883 = vadd.f32 %v851, %v389
      %v884 = vadd.f32 %v852, %v394
      %v885 = vadd.f32 %v853, %v399
      %v886 = vadd.f32 %v854, %v404
      %v887 = vadd.f32 %v855, %v409
      %v888 = vadd.f32 %v856, %v414
      %v889 = vadd.f32 %v857, %v419
      %v890 = vadd.f32 %v858, %v424
      %v891 = vadd.f32 %v859, %v429
      %v892 = vadd.f32 %v860, %v434
      %v893 = vadd.f32 %v861, %v439
      %v894 = vadd.f32 %v862, %v444
      %v895 = vadd.f32 %v863, %v449
      %v896 = vadd.f32 %v864, %v454
      %v897 = vadd.f32 %v865, %v459
      %v898 = vadd.f32 %v866, %v464
      %v899 = vadd.f32 %v867, %v469
      %v900 = vadd.f32 %v868, %v474
      %v901 = vadd.f32 %v869, %v479
      %v902 = vadd.f32 %v870, %v484
      %903 = vmatpush.msra.mxu0 %v819
      %904 = vmatpush.msra.mxu0 %v818
      %905 = vmatpush.msra.mxu0 %v817
      %906 = vmatpush.msra.mxu0 %v816
      %907 = vmatpush.msra.mxu0 %v815
      %908 = vmatpush.msra.mxu0 %v814
      %909 = vmatpush.msra.mxu0 %v813
      %910 = vmatpush.msra.mxu0 %v812
      %911 = vmatpush.msra.mxu0 %v811
      %912 = vmatpush.msra.mxu0 %v810
      %913 = vmatpush.msra.mxu0 %v809
      %914 = vmatpush.msra.mxu0 %v808
      %915 = vmatpush.msra.mxu0 %v807
      %916 = vmatpush.msra.mxu0 %v806
      %917 = vmatpush.msra.mxu0 %v805
      %918 = vmatpush.msra.mxu0 %v804
      %919 = vmatmul.f32.gmra.mxu0 %v30
      %v920 = vpop.f32.mrf.mxu0
      %v921 = vadd.f32 %v871, %v920
      %922 = vmatmul.f32.gmra.mxu0 %v32
      %v923 = vpop.f32.mrf.mxu0
      %v924 = vadd.f32 %v872, %v923
      %925 = vmatmul.f32.gmra.mxu0 %v34
      %v926 = vpop.f32.mrf.mxu0
      %v927 = vadd.f32 %v873, %v926
      %928 = vmatmul.f32.gmra.mxu0 %v36
      %v929 = vpop.f32.mrf.mxu0
      %v930 = vadd.f32 %v874, %v929
      %931 = vmatmul.f32.gmra.mxu0 %v38
      %v932 = vpop.f32.mrf.mxu0
      %v933 = vadd.f32 %v875, %v932
      %934 = vmatmul.f32.gmra.mxu0 %v40
      %v935 = vpop.f32.mrf.mxu0
      %v936 = vadd.f32 %v876, %v935
      %937 = vmatmul.f32.gmra.mxu0 %v42
      %v938 = vpop.f32.mrf.mxu0
      %v939 = vadd.f32 %v877, %v938
      %940 = vmatmul.f32.gmra.mxu0 %v44
      %v941 = vpop.f32.mrf.mxu0
      %v942 = vadd.f32 %v878, %v941
      %943 = vmatmul.f32.gmra.mxu0 %v46
      %v944 = vpop.f32.mrf.mxu0
      %v945 = vadd.f32 %v879, %v944
      %946 = vmatmul.f32.gmra.mxu0 %v48
      %v947 = vpop.f32.mrf.mxu0
      %v948 = vadd.f32 %v880, %v947
      %949 = vmatmul.f32.gmra.mxu0 %v50
      %v950 = vpop.f32.mrf.mxu0
      %v951 = vadd.f32 %v881, %v950
      %952 = vmatmul.f32.gmra.mxu0 %v52
      %v953 = vpop.f32.mrf.mxu0
      %v954 = vadd.f32 %v882, %v953
      %955 = vmatmul.f32.gmra.mxu0 %v54
      %v956 = vpop.f32.mrf.mxu0
      %v957 = vadd.f32 %v883, %v956
      %958 = vmatmul.f32.gmra.mxu0 %v56
      %v959 = vpop.f32.mrf.mxu0
      %v960 = vadd.f32 %v884, %v959
      %961 = vmatmul.f32.gmra.mxu0 %v58
      %v962 = vpop.f32.mrf.mxu0
      %v963 = vadd.f32 %v885, %v962
      %964 = vmatmul.f32.gmra.mxu0 %v60
      %v965 = vpop.f32.mrf.mxu0
      %v966 = vadd.f32 %v886, %v965
      %967 = vmatmul.f32.gmra.mxu0 %v62
      %v968 = vpop.f32.mrf.mxu0
      %v969 = vadd.f32 %v887, %v968
      %970 = vmatmul.f32.gmra.mxu0 %v64
      %v971 = vpop.f32.mrf.mxu0
      %v972 = vadd.f32 %v888, %v971
      %973 = vmatmul.f32.gmra.mxu0 %v66
      %v974 = vpop.f32.mrf.mxu0
      %v975 = vadd.f32 %v889, %v974
      %976 = vmatmul.f32.gmra.mxu0 %v68
      %v977 = vpop.f32.mrf.mxu0
      %v978 = vadd.f32 %v890, %v977
      %979 = vmatmul.f32.gmra.mxu0 %v70
      %v980 = vpop.f32.mrf.mxu0
      %v981 = vadd.f32 %v891, %v980
      %982 = vmatmul.f32.gmra.mxu0 %v72
      %v983 = vpop.f32.mrf.mxu0
      %v984 = vadd.f32 %v892, %v983
      %985 = vmatmul.f32.gmra.mxu0 %v74
      %v986 = vpop.f32.mrf.mxu0
      %v987 = vadd.f32 %v893, %v986
      %988 = vmatmul.f32.gmra.mxu0 %v76
      %v989 = vpop.f32.mrf.mxu0
      %v990 = vadd.f32 %v894, %v989
      %991 = vmatmul.f32.gmra.mxu0 %v78
      %v992 = vpop.f32.mrf.mxu0
      %v993 = vadd.f32 %v895, %v992
      %994 = vmatmul.f32.gmra.mxu0 %v80
      %v995 = vpop.f32.mrf.mxu0
      %v996 = vadd.f32 %v896, %v995
      %997 = vmatmul.f32.gmra.mxu0 %v82
      %v998 = vpop.f32.mrf.mxu0
      %v999 = vadd.f32 %v897, %v998
      %1000 = vmatmul.f32.gmra.mxu0 %v84
      %v1001 = vpop.f32.mrf.mxu0
      %v1002 = vadd.f32 %v898, %v1001
      %1003 = vmatmul.f32.gmra.mxu0 %v86
      %v1004 = vpop.f32.mrf.mxu0
      %v1005 = vadd.f32 %v899, %v1004
      %1006 = vmatmul.f32.gmra.mxu0 %v88
      %v1007 = vpop.f32.mrf.mxu0
      %v1008 = vadd.f32 %v900, %v1007
      %1009 = vmatmul.f32.gmra.mxu0 %v90
      %v1010 = vpop.f32.mrf.mxu0
      %v1011 = vadd.f32 %v901, %v1010
      %1012 = vmatmul.f32.gmra.mxu0 %v92
      %v1013 = vpop.f32.mrf.mxu0
      %v1014 = vadd.f32 %v902, %v1013
      %1015 = vdwg.mxu0
      %1016 = vmatpush.msra.mxu0 %v835
      %1017 = vmatpush.msra.mxu0 %v834
      %1018 = vmatpush.msra.mxu0 %v833
      %1019 = vmatpush.msra.mxu0 %v832
      %1020 = vmatpush.msra.mxu0 %v831
      %1021 = vmatpush.msra.mxu0 %v830
      %1022 = vmatpush.msra.mxu0 %v829
      %1023 = vmatpush.msra.mxu0 %v828
      %1024 = vmatpush.msra.mxu0 %v827
      %1025 = vmatpush.msra.mxu0 %v826
      %1026 = vmatpush.msra.mxu0 %v825
      %1027 = vmatpush.msra.mxu0 %v824
      %1028 = vmatpush.msra.mxu0 %v823
      %1029 = vmatpush.msra.mxu0 %v822
      %1030 = vmatpush.msra.mxu0 %v821
      %1031 = vmatpush.msra.mxu0 %v820
      %1032 = vmatmul.f32.gmra.mxu0 %v31
      %v1033 = vpop.f32.mrf.mxu0
      %v1034 = vadd.f32 %v921, %v1033
      %1035 = vmatmul.f32.gmra.mxu0 %v33
      %v1036 = vpop.f32.mrf.mxu0
      %v1037 = vadd.f32 %v924, %v1036
      %1038 = vmatmul.f32.gmra.mxu0 %v35
      %v1039 = vpop.f32.mrf.mxu0
      %v1040 = vadd.f32 %v927, %v1039
      %1041 = vmatmul.f32.gmra.mxu0 %v37
      %v1042 = vpop.f32.mrf.mxu0
      %v1043 = vadd.f32 %v930, %v1042
      %1044 = vmatmul.f32.gmra.mxu0 %v39
      %v1045 = vpop.f32.mrf.mxu0
      %v1046 = vadd.f32 %v933, %v1045
      %1047 = vmatmul.f32.gmra.mxu0 %v41
      %v1048 = vpop.f32.mrf.mxu0
      %v1049 = vadd.f32 %v936, %v1048
      %1050 = vmatmul.f32.gmra.mxu0 %v43
      %v1051 = vpop.f32.mrf.mxu0
      %v1052 = vadd.f32 %v939, %v1051
      %1053 = vmatmul.f32.gmra.mxu0 %v45
      %v1054 = vpop.f32.mrf.mxu0
      %v1055 = vadd.f32 %v942, %v1054
      %1056 = vmatmul.f32.gmra.mxu0 %v47
      %v1057 = vpop.f32.mrf.mxu0
      %v1058 = vadd.f32 %v945, %v1057
      %1059 = vmatmul.f32.gmra.mxu0 %v49
      %v1060 = vpop.f32.mrf.mxu0
      %v1061 = vadd.f32 %v948, %v1060
      %1062 = vmatmul.f32.gmra.mxu0 %v51
      %v1063 = vpop.f32.mrf.mxu0
      %v1064 = vadd.f32 %v951, %v1063
      %1065 = vmatmul.f32.gmra.mxu0 %v53
      %v1066 = vpop.f32.mrf.mxu0
      %v1067 = vadd.f32 %v954, %v1066
      %1068 = vmatmul.f32.gmra.mxu0 %v55
      %v1069 = vpop.f32.mrf.mxu0
      %v1070 = vadd.f32 %v957, %v1069
      %1071 = vmatmul.f32.gmra.mxu0 %v57
      %v1072 = vpop.f32.mrf.mxu0
      %v1073 = vadd.f32 %v960, %v1072
      %1074 = vmatmul.f32.gmra.mxu0 %v59
      %v1075 = vpop.f32.mrf.mxu0
      %v1076 = vadd.f32 %v963, %v1075
      %1077 = vmatmul.f32.gmra.mxu0 %v61
      %v1078 = vpop.f32.mrf.mxu0
      %v1079 = vadd.f32 %v966, %v1078
      %1080 = vmatmul.f32.gmra.mxu0 %v63
      %v1081 = vpop.f32.mrf.mxu0
      %v1082 = vadd.f32 %v969, %v1081
      %1083 = vmatmul.f32.gmra.mxu0 %v65
      %v1084 = vpop.f32.mrf.mxu0
      %v1085 = vadd.f32 %v972, %v1084
      %1086 = vmatmul.f32.gmra.mxu0 %v67
      %v1087 = vpop.f32.mrf.mxu0
      %v1088 = vadd.f32 %v975, %v1087
      %1089 = vmatmul.f32.gmra.mxu0 %v69
      %v1090 = vpop.f32.mrf.mxu0
      %v1091 = vadd.f32 %v978, %v1090
      %1092 = vmatmul.f32.gmra.mxu0 %v71
      %v1093 = vpop.f32.mrf.mxu0
      %v1094 = vadd.f32 %v981, %v1093
      %1095 = vmatmul.f32.gmra.mxu0 %v73
      %v1096 = vpop.f32.mrf.mxu0
      %v1097 = vadd.f32 %v984, %v1096
      %1098 = vmatmul.f32.gmra.mxu0 %v75
      %v1099 = vpop.f32.mrf.mxu0
      %v1100 = vadd.f32 %v987, %v1099
      %1101 = vmatmul.f32.gmra.mxu0 %v77
      %v1102 = vpop.f32.mrf.mxu0
      %v1103 = vadd.f32 %v990, %v1102
      %1104 = vmatmul.f32.gmra.mxu0 %v79
      %v1105 = vpop.f32.mrf.mxu0
      %v1106 = vadd.f32 %v993, %v1105
      %1107 = vmatmul.f32.gmra.mxu0 %v81
      %v1108 = vpop.f32.mrf.mxu0
      %v1109 = vadd.f32 %v996, %v1108
      %1110 = vmatmul.f32.gmra.mxu0 %v83
      %v1111 = vpop.f32.mrf.mxu0
      %v1112 = vadd.f32 %v999, %v1111
      %1113 = vmatmul.f32.gmra.mxu0 %v85
      %v1114 = vpop.f32.mrf.mxu0
      %v1115 = vadd.f32 %v1002, %v1114
      %1116 = vmatmul.f32.gmra.mxu0 %v87
      %v1117 = vpop.f32.mrf.mxu0
      %v1118 = vadd.f32 %v1005, %v1117
      %1119 = vmatmul.f32.gmra.mxu0 %v89
      %v1120 = vpop.f32.mrf.mxu0
      %v1121 = vadd.f32 %v1008, %v1120
      %1122 = vmatmul.f32.gmra.mxu0 %v91
      %v1123 = vpop.f32.mrf.mxu0
      %v1124 = vadd.f32 %v1011, %v1123
      %1125 = vmatmul.f32.gmra.mxu0 %v93
      %v1126 = vpop.f32.mrf.mxu0
      %v1127 = vadd.f32 %v1014, %v1126
      %1128 = vdwg.mxu0
      %v1129 = vmul.f32 %v1034, %v1034
      %v1130 = vmul.f32 %v1037, %v1037
      %v1131 = vmul.f32 %v1040, %v1040
      %v1132 = vmul.f32 %v1043, %v1043
      %v1133 = vmul.f32 %v1046, %v1046
      %v1134 = vmul.f32 %v1049, %v1049
      %v1135 = vmul.f32 %v1052, %v1052
      %v1136 = vmul.f32 %v1055, %v1055
      %v1137 = vmul.f32 %v1058, %v1058
      %v1138 = vmul.f32 %v1061, %v1061
      %v1139 = vmul.f32 %v1064, %v1064
      %v1140 = vmul.f32 %v1067, %v1067
      %v1141 = vmul.f32 %v1070, %v1070
      %v1142 = vmul.f32 %v1073, %v1073
      %v1143 = vmul.f32 %v1076, %v1076
      %v1144 = vmul.f32 %v1079, %v1079
      %v1145 = vmul.f32 %v1082, %v1082
      %v1146 = vmul.f32 %v1085, %v1085
      %v1147 = vmul.f32 %v1088, %v1088
      %v1148 = vmul.f32 %v1091, %v1091
      %v1149 = vmul.f32 %v1094, %v1094
      %v1150 = vmul.f32 %v1097, %v1097
      %v1151 = vmul.f32 %v1100, %v1100
      %v1152 = vmul.f32 %v1103, %v1103
      %v1153 = vmul.f32 %v1106, %v1106
      %v1154 = vmul.f32 %v1109, %v1109
      %v1155 = vmul.f32 %v1112, %v1112
      %v1156 = vmul.f32 %v1115, %v1115
      %v1157 = vmul.f32 %v1118, %v1118
      %v1158 = vmul.f32 %v1121, %v1121
      %v1159 = vmul.f32 %v1124, %v1124
      %v1160 = vmul.f32 %v1127, %v1127
      %v1161 = vadd.f32 %v1129, %v1145
      %v1162 = vadd.f32 %v1130, %v1146
      %v1163 = vadd.f32 %v1131, %v1147
      %v1164 = vadd.f32 %v1132, %v1148
      %v1165 = vadd.f32 %v1133, %v1149
      %v1166 = vadd.f32 %v1134, %v1150
      %v1167 = vadd.f32 %v1135, %v1151
      %v1168 = vadd.f32 %v1136, %v1152
      %v1169 = vadd.f32 %v1137, %v1153
      %v1170 = vadd.f32 %v1138, %v1154
      %v1171 = vadd.f32 %v1139, %v1155
      %v1172 = vadd.f32 %v1140, %v1156
      %v1173 = vadd.f32 %v1141, %v1157
      %v1174 = vadd.f32 %v1142, %v1158
      %v1175 = vadd.f32 %v1143, %v1159
      %v1176 = vadd.f32 %v1144, %v1160
      %v1177 = vadd.f32 %v1161, 1e-12
      %v1178 = vadd.f32 %v1162, 1e-12
      %v1179 = vadd.f32 %v1163, 1e-12
      %v1180 = vadd.f32 %v1164, 1e-12
      %v1181 = vadd.f32 %v1165, 1e-12
      %v1182 = vadd.f32 %v1166, 1e-12
      %v1183 = vadd.f32 %v1167, 1e-12
      %v1184 = vadd.f32 %v1168, 1e-12
      %v1185 = vadd.f32 %v1169, 1e-12
      %v1186 = vadd.f32 %v1170, 1e-12
      %v1187 = vadd.f32 %v1171, 1e-12
      %v1188 = vadd.f32 %v1172, 1e-12
      %v1189 = vadd.f32 %v1173, 1e-12
      %v1190 = vadd.f32 %v1174, 1e-12
      %v1191 = vadd.f32 %v1175, 1e-12
      %v1192 = vadd.f32 %v1176, 1e-12
      %v1193 = vrsqrt.pop %v1177
      %v1194 = vmul.f32 %v1193, %v1177
      %v1195 = vmul.f32 %v1194, %v1193
      %v1196 = vmul.f32 0.5, %v1195
      %v1197 = vsub.f32 1.5, %v1196
      %v1198 = vmul.f32 %v1193, %v1197
      %vm1199 = vweird.f32 %v1177
      %vm1200 = vweird.f32 %v1193
      %vm1201 = vmor %vm1199, %vm1200
      %v1202 = vsel %vm1201, %v1193, %v1198
      %v1203 = vrsqrt.pop %v1178
      %v1204 = vmul.f32 %v1203, %v1178
      %v1205 = vmul.f32 %v1204, %v1203
      %v1206 = vmul.f32 0.5, %v1205
      %v1207 = vsub.f32 1.5, %v1206
      %v1208 = vmul.f32 %v1203, %v1207
      %vm1209 = vweird.f32 %v1178
      %vm1210 = vweird.f32 %v1203
      %vm1211 = vmor %vm1209, %vm1210
      %v1212 = vsel %vm1211, %v1203, %v1208
      %v1213 = vrsqrt.pop %v1179
      %v1214 = vmul.f32 %v1213, %v1179
      %v1215 = vmul.f32 %v1214, %v1213
      %v1216 = vmul.f32 0.5, %v1215
      %v1217 = vsub.f32 1.5, %v1216
      %v1218 = vmul.f32 %v1213, %v1217
      %vm1219 = vweird.f32 %v1179
      %vm1220 = vweird.f32 %v1213
      %vm1221 = vmor %vm1219, %vm1220
      %v1222 = vsel %vm1221, %v1213, %v1218
      %v1223 = vrsqrt.pop %v1180
      %v1224 = vmul.f32 %v1223, %v1180
      %v1225 = vmul.f32 %v1224, %v1223
      %v1226 = vmul.f32 0.5, %v1225
      %v1227 = vsub.f32 1.5, %v1226
      %v1228 = vmul.f32 %v1223, %v1227
      %vm1229 = vweird.f32 %v1180
      %vm1230 = vweird.f32 %v1223
      %vm1231 = vmor %vm1229, %vm1230
      %v1232 = vsel %vm1231, %v1223, %v1228
      %v1233 = vrsqrt.pop %v1181
      %v1234 = vmul.f32 %v1233, %v1181
      %v1235 = vmul.f32 %v1234, %v1233
      %v1236 = vmul.f32 0.5, %v1235
      %v1237 = vsub.f32 1.5, %v1236
      %v1238 = vmul.f32 %v1233, %v1237
      %vm1239 = vweird.f32 %v1181
      %vm1240 = vweird.f32 %v1233
      %vm1241 = vmor %vm1239, %vm1240
      %v1242 = vsel %vm1241, %v1233, %v1238
      %v1243 = vrsqrt.pop %v1182
      %v1244 = vmul.f32 %v1243, %v1182
      %v1245 = vmul.f32 %v1244, %v1243
      %v1246 = vmul.f32 0.5, %v1245
      %v1247 = vsub.f32 1.5, %v1246
      %v1248 = vmul.f32 %v1243, %v1247
      %vm1249 = vweird.f32 %v1182
      %vm1250 = vweird.f32 %v1243
      %vm1251 = vmor %vm1249, %vm1250
      %v1252 = vsel %vm1251, %v1243, %v1248
      %v1253 = vrsqrt.pop %v1183
      %v1254 = vmul.f32 %v1253, %v1183
      %v1255 = vmul.f32 %v1254, %v1253
      %v1256 = vmul.f32 0.5, %v1255
      %v1257 = vsub.f32 1.5, %v1256
      %v1258 = vmul.f32 %v1253, %v1257
      %vm1259 = vweird.f32 %v1183
      %vm1260 = vweird.f32 %v1253
      %vm1261 = vmor %vm1259, %vm1260
      %v1262 = vsel %vm1261, %v1253, %v1258
      %v1263 = vrsqrt.pop %v1184
      %v1264 = vmul.f32 %v1263, %v1184
      %v1265 = vmul.f32 %v1264, %v1263
      %v1266 = vmul.f32 0.5, %v1265
      %v1267 = vsub.f32 1.5, %v1266
      %v1268 = vmul.f32 %v1263, %v1267
      %vm1269 = vweird.f32 %v1184
      %vm1270 = vweird.f32 %v1263
      %vm1271 = vmor %vm1269, %vm1270
      %v1272 = vsel %vm1271, %v1263, %v1268
      %v1273 = vrsqrt.pop %v1185
      %v1274 = vmul.f32 %v1273, %v1185
      %v1275 = vmul.f32 %v1274, %v1273
      %v1276 = vmul.f32 0.5, %v1275
      %v1277 = vsub.f32 1.5, %v1276
      %v1278 = vmul.f32 %v1273, %v1277
      %vm1279 = vweird.f32 %v1185
      %vm1280 = vweird.f32 %v1273
      %vm1281 = vmor %vm1279, %vm1280
      %v1282 = vsel %vm1281, %v1273, %v1278
      %v1283 = vrsqrt.pop %v1186
      %v1284 = vmul.f32 %v1283, %v1186
      %v1285 = vmul.f32 %v1284, %v1283
      %v1286 = vmul.f32 0.5, %v1285
      %v1287 = vsub.f32 1.5, %v1286
      %v1288 = vmul.f32 %v1283, %v1287
      %vm1289 = vweird.f32 %v1186
      %vm1290 = vweird.f32 %v1283
      %vm1291 = vmor %vm1289, %vm1290
      %v1292 = vsel %vm1291, %v1283, %v1288
      %v1293 = vrsqrt.pop %v1187
      %v1294 = vmul.f32 %v1293, %v1187
      %v1295 = vmul.f32 %v1294, %v1293
      %v1296 = vmul.f32 0.5, %v1295
      %v1297 = vsub.f32 1.5, %v1296
      %v1298 = vmul.f32 %v1293, %v1297
      %vm1299 = vweird.f32 %v1187
      %vm1300 = vweird.f32 %v1293
      %vm1301 = vmor %vm1299, %vm1300
      %v1302 = vsel %vm1301, %v1293, %v1298
      %v1303 = vrsqrt.pop %v1188
      %v1304 = vmul.f32 %v1303, %v1188
      %v1305 = vmul.f32 %v1304, %v1303
      %v1306 = vmul.f32 0.5, %v1305
      %v1307 = vsub.f32 1.5, %v1306
      %v1308 = vmul.f32 %v1303, %v1307
      %vm1309 = vweird.f32 %v1188
      %vm1310 = vweird.f32 %v1303
      %vm1311 = vmor %vm1309, %vm1310
      %v1312 = vsel %vm1311, %v1303, %v1308
      %v1313 = vrsqrt.pop %v1189
      %v1314 = vmul.f32 %v1313, %v1189
      %v1315 = vmul.f32 %v1314, %v1313
      %v1316 = vmul.f32 0.5, %v1315
      %v1317 = vsub.f32 1.5, %v1316
      %v1318 = vmul.f32 %v1313, %v1317
      %vm1319 = vweird.f32 %v1189
      %vm1320 = vweird.f32 %v1313
      %vm1321 = vmor %vm1319, %vm1320
      %v1322 = vsel %vm1321, %v1313, %v1318
      %v1323 = vrsqrt.pop %v1190
      %v1324 = vmul.f32 %v1323, %v1190
      %v1325 = vmul.f32 %v1324, %v1323
      %v1326 = vmul.f32 0.5, %v1325
      %v1327 = vsub.f32 1.5, %v1326
      %v1328 = vmul.f32 %v1323, %v1327
      %vm1329 = vweird.f32 %v1190
      %vm1330 = vweird.f32 %v1323
      %vm1331 = vmor %vm1329, %vm1330
      %v1332 = vsel %vm1331, %v1323, %v1328
      %v1333 = vrsqrt.pop %v1191
      %v1334 = vmul.f32 %v1333, %v1191
      %v1335 = vmul.f32 %v1334, %v1333
      %v1336 = vmul.f32 0.5, %v1335
      %v1337 = vsub.f32 1.5, %v1336
      %v1338 = vmul.f32 %v1333, %v1337
      %vm1339 = vweird.f32 %v1191
      %vm1340 = vweird.f32 %v1333
      %vm1341 = vmor %vm1339, %vm1340
      %v1342 = vsel %vm1341, %v1333, %v1338
      %v1343 = vrsqrt.pop %v1192
      %v1344 = vmul.f32 %v1343, %v1192
      %v1345 = vmul.f32 %v1344, %v1343
      %v1346 = vmul.f32 0.5, %v1345
      %v1347 = vsub.f32 1.5, %v1346
      %v1348 = vmul.f32 %v1343, %v1347
      %vm1349 = vweird.f32 %v1192
      %vm1350 = vweird.f32 %v1343
      %vm1351 = vmor %vm1349, %vm1350
      %v1352 = vsel %vm1351, %v1343, %v1348
      %v1353 = vmul.f32 %v1161, %v1202
      %v1354 = vmul.f32 %v1162, %v1212
      %v1355 = vmul.f32 %v1163, %v1222
      %v1356 = vmul.f32 %v1164, %v1232
      %v1357 = vmul.f32 %v1165, %v1242
      %v1358 = vmul.f32 %v1166, %v1252
      %v1359 = vmul.f32 %v1167, %v1262
      %v1360 = vmul.f32 %v1168, %v1272
      %v1361 = vmul.f32 %v1169, %v1282
      %v1362 = vmul.f32 %v1170, %v1292
      %v1363 = vmul.f32 %v1171, %v1302
      %v1364 = vmul.f32 %v1172, %v1312
      %v1365 = vmul.f32 %v1173, %v1322
      %v1366 = vmul.f32 %v1174, %v1332
      %v1367 = vmul.f32 %v1175, %v1342
      %v1368 = vmul.f32 %v1176, %v1352
      %v1369 = vadd.f32 %v1353, %v505
      %v1370 = vadd.f32 %v1354, %v510
      %v1371 = vadd.f32 %v1355, %v515
      %v1372 = vadd.f32 %v1356, %v520
      %v1373 = vadd.f32 %v1357, %v525
      %v1374 = vadd.f32 %v1358, %v530
      %v1375 = vadd.f32 %v1359, %v535
      %v1376 = vadd.f32 %v1360, %v540
      %v1377 = vadd.f32 %v1361, %v545
      %v1378 = vadd.f32 %v1362, %v550
      %v1379 = vadd.f32 %v1363, %v555
      %v1380 = vadd.f32 %v1364, %v560
      %v1381 = vadd.f32 %v1365, %v565
      %v1382 = vadd.f32 %v1366, %v570
      %v1383 = vadd.f32 %v1367, %v575
      %v1384 = vadd.f32 %v1368, %v580
      %v1385 = vmax.f32 %v1369, 0.0
      %v1386 = vmax.f32 %v1370, 0.0
      %v1387 = vmax.f32 %v1371, 0.0
      %v1388 = vmax.f32 %v1372, 0.0
      %v1389 = vmax.f32 %v1373, 0.0
      %v1390 = vmax.f32 %v1374, 0.0
      %v1391 = vmax.f32 %v1375, 0.0
      %v1392 = vmax.f32 %v1376, 0.0
      %v1393 = vmax.f32 %v1377, 0.0
      %v1394 = vmax.f32 %v1378, 0.0
      %v1395 = vmax.f32 %v1379, 0.0
      %v1396 = vmax.f32 %v1380, 0.0
      %v1397 = vmax.f32 %v1381, 0.0
      %v1398 = vmax.f32 %v1382, 0.0
      %v1399 = vmax.f32 %v1383, 0.0
      %v1400 = vmax.f32 %v1384, 0.0
      %v1401 = vmul.f32 %v1385, %v1202
      %v1402 = vmul.f32 %v1386, %v1212
      %v1403 = vmul.f32 %v1387, %v1222
      %v1404 = vmul.f32 %v1388, %v1232
      %v1405 = vmul.f32 %v1389, %v1242
      %v1406 = vmul.f32 %v1390, %v1252
      %v1407 = vmul.f32 %v1391, %v1262
      %v1408 = vmul.f32 %v1392, %v1272
      %v1409 = vmul.f32 %v1393, %v1282
      %v1410 = vmul.f32 %v1394, %v1292
      %v1411 = vmul.f32 %v1395, %v1302
      %v1412 = vmul.f32 %v1396, %v1312
      %v1413 = vmul.f32 %v1397, %v1322
      %v1414 = vmul.f32 %v1398, %v1332
      %v1415 = vmul.f32 %v1399, %v1342
      %v1416 = vmul.f32 %v1400, %v1352
      %v1417 = vmul.f32 %v1401, %v1034
      %v1418 = vmul.f32 %v1402, %v1037
      %v1419 = vmul.f32 %v1403, %v1040
      %v1420 = vmul.f32 %v1404, %v1043
      %v1421 = vmul.f32 %v1405, %v1046
      %v1422 = vmul.f32 %v1406, %v1049
      %v1423 = vmul.f32 %v1407, %v1052
      %v1424 = vmul.f32 %v1408, %v1055
      %v1425 = vmul.f32 %v1409, %v1058
      %v1426 = vmul.f32 %v1410, %v1061
      %v1427 = vmul.f32 %v1411, %v1064
      %v1428 = vmul.f32 %v1412, %v1067
      %v1429 = vmul.f32 %v1413, %v1070
      %v1430 = vmul.f32 %v1414, %v1073
      %v1431 = vmul.f32 %v1415, %v1076
      %v1432 = vmul.f32 %v1416, %v1079
      %v1433 = vmul.f32 %v1401, %v1082
      %v1434 = vmul.f32 %v1402, %v1085
      %v1435 = vmul.f32 %v1403, %v1088
      %v1436 = vmul.f32 %v1404, %v1091
      %v1437 = vmul.f32 %v1405, %v1094
      %v1438 = vmul.f32 %v1406, %v1097
      %v1439 = vmul.f32 %v1407, %v1100
      %v1440 = vmul.f32 %v1408, %v1103
      %v1441 = vmul.f32 %v1409, %v1106
      %v1442 = vmul.f32 %v1410, %v1109
      %v1443 = vmul.f32 %v1411, %v1112
      %v1444 = vmul.f32 %v1412, %v1115
      %v1445 = vmul.f32 %v1413, %v1118
      %v1446 = vmul.f32 %v1414, %v1121
      %v1447 = vmul.f32 %v1415, %v1124
      %v1448 = vmul.f32 %v1416, %v1127
    $region38: #{tpu_custom_call.1} parent=1 // loop_footer
      %s803 = sadd.s32 1, %s799
    $region39: #{tpu_custom_call.1} parent=1 // loop_footer_branch
      %798 = sbr.rel target = $region35
    $region40: #{tpu_custom_call.1} parent=1 // loop_exit
      _
    %1449 = vmatpush.msra.mxu0 %v819
    %1450 = vmatpush.msra.mxu0 %v818
    %1451 = vmatpush.msra.mxu0 %v817
    %1452 = vmatpush.msra.mxu0 %v816
    %1453 = vmatpush.msra.mxu0 %v815
    %1454 = vmatpush.msra.mxu0 %v814
    %1455 = vmatpush.msra.mxu0 %v813
    %1456 = vmatpush.msra.mxu0 %v812
    %1457 = vmatpush.msra.mxu0 %v811
    %1458 = vmatpush.msra.mxu0 %v810
    %1459 = vmatpush.msra.mxu0 %v809
    %1460 = vmatpush.msra.mxu0 %v808
    %1461 = vmatpush.msra.mxu0 %v807
    %1462 = vmatpush.msra.mxu0 %v806
    %1463 = vmatpush.msra.mxu0 %v805
    %1464 = vmatpush.msra.mxu0 %v804
    %1465 = vmatmul.f32.gmra.mxu0 %v94
    %v1466 = vpop.f32.mrf.mxu0
    %v1467 = vadd.f32 %v589, %v1466
    %1468 = vmatmul.f32.gmra.mxu0 %v96
    %v1469 = vpop.f32.mrf.mxu0
    %v1470 = vadd.f32 %v594, %v1469
    %1471 = vmatmul.f32.gmra.mxu0 %v98
    %v1472 = vpop.f32.mrf.mxu0
    %v1473 = vadd.f32 %v599, %v1472
    %1474 = vmatmul.f32.gmra.mxu0 %v100
    %v1475 = vpop.f32.mrf.mxu0
    %v1476 = vadd.f32 %v604, %v1475
    %1477 = vdwg.mxu0
    %1478 = vmatpush.msra.mxu0 %v835
    %1479 = vmatpush.msra.mxu0 %v834
    %1480 = vmatpush.msra.mxu0 %v833
    %1481 = vmatpush.msra.mxu0 %v832
    %1482 = vmatpush.msra.mxu0 %v831
    %1483 = vmatpush.msra.mxu0 %v830
    %1484 = vmatpush.msra.mxu0 %v829
    %1485 = vmatpush.msra.mxu0 %v828
    %1486 = vmatpush.msra.mxu0 %v827
    %1487 = vmatpush.msra.mxu0 %v826
    %1488 = vmatpush.msra.mxu0 %v825
    %1489 = vmatpush.msra.mxu0 %v824
    %1490 = vmatpush.msra.mxu0 %v823
    %1491 = vmatpush.msra.mxu0 %v822
    %1492 = vmatpush.msra.mxu0 %v821
    %1493 = vmatpush.msra.mxu0 %v820
    %1494 = vmatmul.f32.gmra.mxu0 %v95
    %v1495 = vpop.f32.mrf.mxu0
    %v1496 = vadd.f32 %v1467, %v1495
    %1497 = vmatmul.f32.gmra.mxu0 %v97
    %v1498 = vpop.f32.mrf.mxu0
    %v1499 = vadd.f32 %v1470, %v1498
    %1500 = vmatmul.f32.gmra.mxu0 %v99
    %v1501 = vpop.f32.mrf.mxu0
    %v1502 = vadd.f32 %v1473, %v1501
    %1503 = vmatmul.f32.gmra.mxu0 %v101
    %v1504 = vpop.f32.mrf.mxu0
    %v1505 = vadd.f32 %v1476, %v1504
    %1506 = vdwg.mxu0
    %v1507 = vmul.f32 %v1496, %v1496
    %v1508 = vmul.f32 %v1499, %v1499
    %v1509 = vmul.f32 %v1502, %v1502
    %v1510 = vmul.f32 %v1505, %v1505
    %v1511 = vadd.f32 %v1507, %v1509
    %v1512 = vadd.f32 %v1508, %v1510
    %1513 = vst [vmem:[#allocation2] sm:$0xff] %v1511
    %1514 = vst [vmem:[#allocation2 + $0x8] sm:$0xff] %v1512
    // Predicated region
    $region41: #{tpu_custom_call.1} parent=1 // pred_check
      _
    $region42: #{tpu_custom_call.1} parent=1 // pred_check_branch
      %1516 = sbr.rel (0) target = $region44
    $region43: #{tpu_custom_call.1} parent=1 // pred_region
      %1518 = vsyncadd [#allocation3], 0
      %s1519 = sshll.u32 [#allocation2], 4
      %s1520 = int_to_ptr.vmem [resolvable:$true] %s1519
      %s1521 = sshll.u32 %s8, 4
      %s1522 = int_to_ptr.hbm [resolvable:$true] %s1521
      %1527 = dma.vmem_to_hbm [thread:$0]  %s1520, 256, %s1522, [#allocation3], 128, 128, 8
    $region44: #{tpu_custom_call.1} parent=1 // pred_fallthru
      _
    // Predicated region
    $region45: #{tpu_custom_call.1} parent=1 // pred_check
      _
    $region46: #{tpu_custom_call.1} parent=1 // pred_check_branch
      %1529 = sbr.rel (0) target = $region48
    $region47: #{tpu_custom_call.1} parent=1 // pred_region
      %1531 = dma.done [#allocation3], 256
    $region48: #{tpu_custom_call.1} parent=1 // pred_fallthru
      _
    %1532 = vsyncpa [#allocation3], 1

</llo_original>
